<compile_context>
chip_gen: v7x
topology: tpu7x:2x2x1
jax: 0.10.0
libtpu: 0.0.40
codegen_flags: <defaults>
</compile_context>

<pallas_src>
import jax
import jax.numpy as jnp
from jax.experimental import pallas as pl
from jax.experimental.pallas import tpu as pltpu


def model3_kernel(x_ref, a_ref, poolt_ref, prott_ref,
                  w1_ref, w2_ref, s1_ref, t1_ref, s2_ref, t2_ref,
                  wfg_ref, wpv_ref, b_ref, out_ref):
    f32 = jnp.float32
    bf16 = jnp.bfloat16

    x = x_ref[...]            # (M, F)  bf16, M = NB*N packed node rows
    a = a_ref[...]            # (M, M)  bf16 block-diagonal normalized adjacency

    # --- GCNConv1 + folded eval-BatchNorm + ReLU (Dropout(eval) = identity) ---
    h = jnp.dot(x, w1_ref[...], preferred_element_type=f32)        # MXU
    h = jnp.dot(a, h.astype(bf16), preferred_element_type=f32)     # MXU, M=256 rows
    h = jnp.maximum(h * s1_ref[...] + t1_ref[...], 0.0)            # VPU f32

    # --- GCNConv2 + folded eval-BatchNorm + ReLU ---
    h = jnp.dot(h.astype(bf16), w2_ref[...], preferred_element_type=f32)
    h = jnp.dot(a, h.astype(bf16), preferred_element_type=f32)
    h = jnp.maximum(h * s2_ref[...] + t2_ref[...], 0.0)

    # --- head: fc1(concat([global_mean_pool(h), protein_mlp(p)])) ---
    # graph half:  pool @ (h @ wf_g)  ==  sublane-reduce(pool_T * lane-reduce(h*wfg))
    # -> logits land lane-dense (1, NB*B); no width-1 MXU push, no transpose.
    r = jnp.sum(h * wfg_ref[...], axis=-1, keepdims=True)                 # (M, 1)
    logit_g = jnp.sum(poolt_ref[...] * r, axis=0, keepdims=True)          # (1, NB*B)
    # protein half: p_fc2(p_fc1(z)) @ wf_p collapsed on host to one (P, 1) column
    logit_p = jnp.sum(prott_ref[...] * wpv_ref[...], axis=0, keepdims=True)
    logit = logit_g + logit_p + b_ref[...]                                 # (1, NB*B)

    # numerically safe sigmoid
    e_neg = jnp.exp(-logit)
    e_pos = jnp.exp(logit)
    out_ref[...] = jnp.where(logit >= 0.0,
                             1.0 / (1.0 + e_neg),
                             e_pos / (1.0 + e_pos))


def model3_forward(x_p, a_p, pool_t, prot_t, params):
    """Single fused call over the whole packed batch (grid=(1,))."""
    n_logits = pool_t.shape[1]          # NB * B

    operands = [x_p, a_p, pool_t, prot_t,
                params["w1"], params["w2"],
                params["s1"], params["t1"], params["s2"], params["t2"],
                params["wfg_row"], params["wpv_col"], params["b_total"]]

    def full_spec(arr):
        # whole array as one resident VMEM block
        return pl.BlockSpec(arr.shape, lambda i, nd=arr.ndim: (0,) * nd)

    return pl.pallas_call(
        model3_kernel,
        out_shape=jax.ShapeDtypeStruct((1, n_logits), jnp.float32),
        grid_spec=pltpu.PrefetchScalarGridSpec(
            num_scalar_prefetch=0,
            grid=(1,),
            in_specs=[full_spec(o) for o in operands],
            out_specs=pl.BlockSpec((1, n_logits), lambda i: (0, 0)),
        ),
        compiler_params=pltpu.CompilerParams(
            dimension_semantics=("arbitrary",),   # sub-us work: no megacore split
            vmem_limit_bytes=32 * 1024 * 1024,    # explicit guard (v7x: 64 MiB phys)
        ),
    )(*operands)


# ------------------------- host-side helpers -------------------------

def build_normalized_adj(edge_index, num_nodes):
    """Dense GCN normalization: D^{-1/2} (A + I) D^{-1/2} (symmetric edges)."""
    src, dst = edge_index[0], edge_index[1]
    a = jnp.zeros((num_nodes, num_nodes), jnp.float32).at[dst, src].add(1.0)
    a = a + jnp.eye(num_nodes, dtype=jnp.float32)
    dinv = jax.lax.rsqrt(a.sum(axis=1))
    return a * dinv[:, None] * dinv[None, :]


def build_pool_matrix(batch, num_graphs):
    onehot = (batch[None, :] == jnp.arange(num_graphs)[:, None]).astype(jnp.float32)
    return onehot / onehot.sum(axis=1, keepdims=True)


def fold_bn(gamma, beta, mean, var, eps=1e-5):
    scale = gamma * jax.lax.rsqrt(var + eps)
    shift = beta - mean * scale
    return scale.reshape(1, -1), shift.reshape(1, -1)


def pack_block_diag(mats):
    """(NB, r, c) -> block-diagonal (NB*r, NB*c).  Supports distinct blocks."""
    nb, r, c = mats.shape
    out = jnp.zeros((nb * r, nb * c), mats.dtype)
    for i in range(nb):
        out = out.at[i * r:(i + 1) * r, i * c:(i + 1) * c].set(mats[i])
    return out


if __name__ == "__main__":
    # ---- small, deterministic problem sizes consistent with Model3 ----
    input_dim = 16     # node feature dim
    hidden_dim = 32    # GCN hidden dim
    dim_p1 = 256       # self.dim_p1 (hardcoded in module)
    dim_p2 = 64        # p_fc2 output
    N = 16             # nodes per graph-batch
    B = 2              # graphs per graph-batch == protein batch size
    NB = 16            # graph-batches packed into ONE kernel call (M = NB*N = 256)
    prot_shape = (NB, B, 4, 32)   # protein_data, flattened to (NB, B, 128)

    key = jax.random.PRNGKey(0)
    ks = jax.random.split(key, 20)

    # ---- graph data (deterministic bidirectional ring edges within each graph) ----
    x = jax.random.normal(ks[0], (NB, N, input_dim), jnp.float32)
    half = N // B
    src, dst = [], []
    for g in range(B):
        base = g * half
        for i in range(half):
            u, v = base + i, base + (i + 1) % half
            src += [u, v]
            dst += [v, u]
    edge_index = jnp.array([src, dst], dtype=jnp.int32)
    batch = jnp.repeat(jnp.arange(B, dtype=jnp.int32), half)
    protein = jax.random.normal(ks[1], prot_shape, jnp.float32)

    a_hat_1 = build_normalized_adj(edge_index, N)
    pool_1 = build_pool_matrix(batch, B)
    a_hat = jnp.tile(a_hat_1[None], (NB, 1, 1))      # (NB, N, N)
    pool = jnp.tile(pool_1[None], (NB, 1, 1))        # (NB, B, N)
    protein_flat = protein.reshape(NB, B, -1)        # (NB, B, P)
    prot_flat_dim = protein_flat.shape[-1]

    # ---- deterministic parameters (original, un-folded) ----
    def lin(k, fan_in, fan_out):
        return jax.random.normal(k, (fan_in, fan_out), jnp.float32) * 0.1

    s1, t1 = fold_bn(1.0 + 0.1 * jax.random.normal(ks[4], (hidden_dim,)),
                     0.1 * jax.random.normal(ks[5], (hidden_dim,)),
                     0.05 * jax.random.normal(ks[6], (hidden_dim,)),
                     jnp.abs(1.0 + 0.1 * jax.random.normal(ks[7], (hidden_dim,))))
    s2, t2 = fold_bn(1.0 + 0.1 * jax.random.normal(ks[8], (hidden_dim,)),
                     0.1 * jax.random.normal(ks[9], (hidden_dim,)),
                     0.05 * jax.random.normal(ks[10], (hidden_dim,)),
                     jnp.abs(1.0 + 0.1 * jax.random.normal(ks[11], (hidden_dim,))))

    w1 = lin(ks[2], input_dim, hidden_dim)
    b1 = 0.1 * jax.random.normal(ks[3], (1, hidden_dim), jnp.float32)
    w2 = lin(ks[12], hidden_dim, hidden_dim)
    b2 = 0.1 * jax.random.normal(ks[13], (1, hidden_dim), jnp.float32)
    wp1 = lin(ks[14], prot_flat_dim, dim_p1)
    bp1 = 0.1 * jax.random.normal(ks[15], (1, dim_p1), jnp.float32)
    wp2 = lin(ks[17], dim_p1, dim_p2)
    bp2 = 0.1 * jax.random.normal(ks[18], (1, dim_p2), jnp.float32)
    wf_full = lin(ks[16], hidden_dim + dim_p2, 1)     # fc1 weight over concat([g, p])
    wf_g, wf_p = wf_full[:hidden_dim, :], wf_full[hidden_dim:, :]
    bf = 0.1 * jax.random.normal(ks[19], (1, 1), jnp.float32)

    # ---- host-side algebraic folds (exact up to f32 rounding) ----
    # protein branch collapsed: p_fc2(p_fc1(z)) @ wf_p = z @ wpv + prot_off
    wpv_col = wp1 @ wp2 @ wf_p                        # (P, 1)
    prot_off = (bp1 @ wp2 + bp2) @ wf_p               # (1, 1)
    # GCN conv biases folded into eval-BN shift
    t1f = b1 * s1 + t1
    t2f = b2 * s2 + t2

    bf16 = jnp.bfloat16
    params = dict(
        w1=w1.astype(bf16), w2=w2.astype(bf16),
        s1=s1, t1=t1f, s2=s2, t2=t2f,
        wfg_row=wf_g.T,                               # (1, hidden_dim) f32
        wpv_col=wpv_col,                              # (P, 1)          f32
        b_total=bf + prot_off,                        # (1, 1)          f32
    )

    # ---- pack the whole batch into one block-diagonal problem ----
    x_p = x.reshape(NB * N, input_dim).astype(bf16)               # (256, 16)
    a_p = pack_block_diag(a_hat).astype(bf16)                     # (256, 256)
    pool_p = pack_block_diag(pool)                                # (32, 256)
    pool_t = pool_p.T.astype(bf16)                                # (256, 32)
    prot_t = protein_flat.reshape(NB * B, -1).T.astype(bf16)      # (128, 32)

    out = jax.jit(model3_forward)(x_p, a_p, pool_t, prot_t, params)
    out = jax.block_until_ready(out)

    # ---- reference 1: same packed math / dtypes as the kernel (tight check) ----
    def ref_packed(xp, ap, poolt, prott):
        f32 = jnp.float32
        h = jnp.dot(xp, params["w1"], preferred_element_type=f32)
        h = jnp.dot(ap, h.astype(bf16), preferred_element_type=f32)
        h = jnp.maximum(h * s1 + t1f, 0.0)
        h = jnp.dot(h.astype(bf16), params["w2"], preferred_element_type=f32)
        h = jnp.dot(ap, h.astype(bf16), preferred_element_type=f32)
        h = jnp.maximum(h * s2 + t2f, 0.0)
        r = jnp.sum(h * params["wfg_row"], axis=-1, keepdims=True)
        lg = jnp.sum(poolt * r, axis=0, keepdims=True)
        lp = jnp.sum(prott * params["wpv_col"], axis=0, keepdims=True)
        return jax.nn.sigmoid(lg + lp + params["b_total"])

    ref_bf = ref_packed(x_p, a_p, pool_t, prot_t)

    # ---- reference 2: original full-f32, un-folded Model3 forward (loose check) ----
    def ref_f32_one(xb, ab, poolb, protb):
        h = ab @ (xb @ w1) + b1
        h = jnp.maximum(h * s1 + t1, 0.0)
        h = ab @ (h @ w2) + b2
        h = jnp.maximum(h * s2 + t2, 0.0)
        g = poolb @ h
        p = protb @ wp1 + bp1
        p = p @ wp2 + bp2
        z = jnp.concatenate([g, p], axis=1)
        return jax.nn.sigmoid(z @ wf_full + bf)

    ref_f32 = jax.vmap(ref_f32_one)(x, a_hat, pool, protein_flat)   # (NB, B, 1)

    assert out.shape == (1, NB * B) and out.dtype == jnp.float32
    assert jnp.allclose(out, ref_bf, atol=2e-4, rtol=2e-4)          # kernel == packed math
    assert jnp.allclose(out.reshape(NB, B, 1), ref_f32,
                        atol=5e-2, rtol=5e-2)                       # bf16 vs f32 sanity
    print("KERNEL_OK")
</pallas_src>

<mosaic_0001>
module attributes {stable_mosaic.version = 11 : i64} {
  func.func @model3_kernel(%arg0: i32, %arg1: memref<256x16xbf16, #tpu.memory_space<vmem>>, %arg2: memref<256x256xbf16, #tpu.memory_space<vmem>>, %arg3: memref<256x32xbf16, #tpu.memory_space<vmem>>, %arg4: memref<128x32xbf16, #tpu.memory_space<vmem>>, %arg5: memref<16x32xbf16, #tpu.memory_space<vmem>>, %arg6: memref<32x32xbf16, #tpu.memory_space<vmem>>, %arg7: memref<1x32xf32, #tpu.memory_space<vmem>>, %arg8: memref<1x32xf32, #tpu.memory_space<vmem>>, %arg9: memref<1x32xf32, #tpu.memory_space<vmem>>, %arg10: memref<1x32xf32, #tpu.memory_space<vmem>>, %arg11: memref<1x32xf32, #tpu.memory_space<vmem>>, %arg12: memref<128x1xf32, #tpu.memory_space<vmem>>, %arg13: memref<1x1xf32, #tpu.memory_space<vmem>>, %arg14: memref<1x32xf32, #tpu.memory_space<vmem>>) attributes {dimension_semantics = [#tpu.dimension_semantics<arbitrary>], iteration_bounds = array<i64: 1>, scalar_prefetch = 0 : i64, scratch_operands = 0 : i64, tpu.core_type = #tpu.core_type<tc>, window_params = [{pipeline_mode = #tpu.pipeline_mode<synchronous>, transform_indices = @transform_0, window_bounds = array<i64: 256, 16>}, {pipeline_mode = #tpu.pipeline_mode<synchronous>, transform_indices = @transform_1, window_bounds = array<i64: 256, 256>}, {pipeline_mode = #tpu.pipeline_mode<synchronous>, transform_indices = @transform_2, window_bounds = array<i64: 256, 32>}, {pipeline_mode = #tpu.pipeline_mode<synchronous>, transform_indices = @transform_3, window_bounds = array<i64: 128, 32>}, {pipeline_mode = #tpu.pipeline_mode<synchronous>, transform_indices = @transform_4, window_bounds = array<i64: 16, 32>}, {pipeline_mode = #tpu.pipeline_mode<synchronous>, transform_indices = @transform_5, window_bounds = array<i64: 32, 32>}, {pipeline_mode = #tpu.pipeline_mode<synchronous>, transform_indices = @transform_6, window_bounds = array<i64: 1, 32>}, {pipeline_mode = #tpu.pipeline_mode<synchronous>, transform_indices = @transform_7, window_bounds = array<i64: 1, 32>}, {pipeline_mode = #tpu.pipeline_mode<synchronous>, transform_indices = @transform_8, window_bounds = array<i64: 1, 32>}, {pipeline_mode = #tpu.pipeline_mode<synchronous>, transform_indices = @transform_9, window_bounds = array<i64: 1, 32>}, {pipeline_mode = #tpu.pipeline_mode<synchronous>, transform_indices = @transform_10, window_bounds = array<i64: 1, 32>}, {pipeline_mode = #tpu.pipeline_mode<synchronous>, transform_indices = @transform_11, window_bounds = array<i64: 128, 1>}, {pipeline_mode = #tpu.pipeline_mode<synchronous>, transform_indices = @transform_12, window_bounds = array<i64: 1, 1>}, {pipeline_mode = #tpu.pipeline_mode<synchronous>, transform_indices = @transform_13, window_bounds = array<i64: 1, 32>}]} {
    %c0 = arith.constant 0 : index
    %c0_0 = arith.constant 0 : index
    %0 = vector.load %arg1[%c0, %c0_0] : memref<256x16xbf16, #tpu.memory_space<vmem>>, vector<256x16xbf16>
    %c0_1 = arith.constant 0 : index
    %c0_2 = arith.constant 0 : index
    %1 = vector.load %arg2[%c0_1, %c0_2] : memref<256x256xbf16, #tpu.memory_space<vmem>>, vector<256x256xbf16>
    %c0_3 = arith.constant 0 : index
    %c0_4 = arith.constant 0 : index
    %2 = vector.load %arg5[%c0_3, %c0_4] : memref<16x32xbf16, #tpu.memory_space<vmem>>, vector<16x32xbf16>
    %cst = arith.constant dense<0.000000e+00> : vector<256x32xf32>
    %3 = tpu.matmul %0, %2, %cst {dimension_numbers = #tpu.dot_dimension_numbers<[1], [0], [0], [1], [0, 0, 1, 1], [], []>} : vector<256x16xbf16>, vector<16x32xbf16>, vector<256x32xf32> -> vector<256x32xf32>
    %4 = arith.truncf %3 : vector<256x32xf32> to vector<256x32xbf16>
    %cst_5 = arith.constant dense<0.000000e+00> : vector<256x32xf32>
    %5 = tpu.matmul %1, %4, %cst_5 {dimension_numbers = #tpu.dot_dimension_numbers<[1], [0], [0], [1], [0, 0, 1, 1], [], []>} : vector<256x256xbf16>, vector<256x32xbf16>, vector<256x32xf32> -> vector<256x32xf32>
    %c0_6 = arith.constant 0 : index
    %c0_7 = arith.constant 0 : index
    %6 = vector.load %arg7[%c0_6, %c0_7] : memref<1x32xf32, #tpu.memory_space<vmem>>, vector<1x32xf32>
    %7 = vector.broadcast %6 : vector<1x32xf32> to vector<256x32xf32>
    %8 = arith.mulf %5, %7 : vector<256x32xf32>
    %c0_8 = arith.constant 0 : index
    %c0_9 = arith.constant 0 : index
    %9 = vector.load %arg8[%c0_8, %c0_9] : memref<1x32xf32, #tpu.memory_space<vmem>>, vector<1x32xf32>
    %10 = vector.broadcast %9 : vector<1x32xf32> to vector<256x32xf32>
    %11 = arith.addf %8, %10 : vector<256x32xf32>
    %cst_10 = arith.constant 0.000000e+00 : f32
    %12 = vector.broadcast %cst_10 : f32 to vector<256x32xf32>
    %13 = arith.maximumf %11, %12 : vector<256x32xf32>
    %14 = arith.truncf %13 : vector<256x32xf32> to vector<256x32xbf16>
    %c0_11 = arith.constant 0 : index
    %c0_12 = arith.constant 0 : index
    %15 = vector.load %arg6[%c0_11, %c0_12] : memref<32x32xbf16, #tpu.memory_space<vmem>>, vector<32x32xbf16>
    %cst_13 = arith.constant dense<0.000000e+00> : vector<256x32xf32>
    %16 = tpu.matmul %14, %15, %cst_13 {dimension_numbers = #tpu.dot_dimension_numbers<[1], [0], [0], [1], [0, 0, 1, 1], [], []>} : vector<256x32xbf16>, vector<32x32xbf16>, vector<256x32xf32> -> vector<256x32xf32>
    %17 = arith.truncf %16 : vector<256x32xf32> to vector<256x32xbf16>
    %cst_14 = arith.constant dense<0.000000e+00> : vector<256x32xf32>
    %18 = tpu.matmul %1, %17, %cst_14 {dimension_numbers = #tpu.dot_dimension_numbers<[1], [0], [0], [1], [0, 0, 1, 1], [], []>} : vector<256x256xbf16>, vector<256x32xbf16>, vector<256x32xf32> -> vector<256x32xf32>
    %c0_15 = arith.constant 0 : index
    %c0_16 = arith.constant 0 : index
    %19 = vector.load %arg9[%c0_15, %c0_16] : memref<1x32xf32, #tpu.memory_space<vmem>>, vector<1x32xf32>
    %20 = vector.broadcast %19 : vector<1x32xf32> to vector<256x32xf32>
    %21 = arith.mulf %18, %20 : vector<256x32xf32>
    %c0_17 = arith.constant 0 : index
    %c0_18 = arith.constant 0 : index
    %22 = vector.load %arg10[%c0_17, %c0_18] : memref<1x32xf32, #tpu.memory_space<vmem>>, vector<1x32xf32>
    %23 = vector.broadcast %22 : vector<1x32xf32> to vector<256x32xf32>
    %24 = arith.addf %21, %23 : vector<256x32xf32>
    %cst_19 = arith.constant 0.000000e+00 : f32
    %25 = vector.broadcast %cst_19 : f32 to vector<256x32xf32>
    %26 = arith.maximumf %24, %25 : vector<256x32xf32>
    %c0_20 = arith.constant 0 : index
    %c0_21 = arith.constant 0 : index
    %27 = vector.load %arg11[%c0_20, %c0_21] : memref<1x32xf32, #tpu.memory_space<vmem>>, vector<1x32xf32>
    %28 = vector.broadcast %27 : vector<1x32xf32> to vector<256x32xf32>
    %29 = arith.mulf %26, %28 : vector<256x32xf32>
    %cst_22 = arith.constant dense<0.000000e+00> : vector<256xf32>
    %30 = vector.multi_reduction <add>, %29, %cst_22 [1] : vector<256x32xf32> to vector<256xf32>
    %31 = vector.shape_cast %30 : vector<256xf32> to vector<256x1xf32>
    %c0_23 = arith.constant 0 : index
    %c0_24 = arith.constant 0 : index
    %32 = vector.load %arg3[%c0_23, %c0_24] : memref<256x32xbf16, #tpu.memory_space<vmem>>, vector<256x32xbf16>
    %33 = arith.extf %32 : vector<256x32xbf16> to vector<256x32xf32>
    %34 = vector.broadcast %31 : vector<256x1xf32> to vector<256x32xf32>
    %35 = arith.mulf %33, %34 : vector<256x32xf32>
    %cst_25 = arith.constant dense<0.000000e+00> : vector<32xf32>
    %36 = vector.multi_reduction <add>, %35, %cst_25 [0] : vector<256x32xf32> to vector<32xf32>
    %37 = vector.shape_cast %36 : vector<32xf32> to vector<1x32xf32>
    %c0_26 = arith.constant 0 : index
    %c0_27 = arith.constant 0 : index
    %38 = vector.load %arg4[%c0_26, %c0_27] : memref<128x32xbf16, #tpu.memory_space<vmem>>, vector<128x32xbf16>
    %c0_28 = arith.constant 0 : index
    %c0_29 = arith.constant 0 : index
    %39 = vector.load %arg12[%c0_28, %c0_29] : memref<128x1xf32, #tpu.memory_space<vmem>>, vector<128x1xf32>
    %40 = arith.extf %38 : vector<128x32xbf16> to vector<128x32xf32>
    %41 = vector.broadcast %39 : vector<128x1xf32> to vector<128x32xf32>
    %42 = arith.mulf %40, %41 : vector<128x32xf32>
    %cst_30 = arith.constant dense<0.000000e+00> : vector<32xf32>
    %43 = vector.multi_reduction <add>, %42, %cst_30 [0] : vector<128x32xf32> to vector<32xf32>
    %44 = vector.shape_cast %43 : vector<32xf32> to vector<1x32xf32>
    %45 = arith.addf %37, %44 : vector<1x32xf32>
    %c0_31 = arith.constant 0 : index
    %c0_32 = arith.constant 0 : index
    %46 = vector.load %arg13[%c0_31, %c0_32] : memref<1x1xf32, #tpu.memory_space<vmem>>, vector<1x1xf32>
    %47 = vector.broadcast %46 : vector<1x1xf32> to vector<1x32xf32>
    %48 = arith.addf %45, %47 : vector<1x32xf32>
    %cst_33 = arith.constant 0.000000e+00 : f32
    %49 = vector.broadcast %cst_33 : f32 to vector<1x32xf32>
    %50 = arith.subf %49, %48 : vector<1x32xf32>
    %51 = math.exp %50 : vector<1x32xf32>
    %52 = math.exp %48 : vector<1x32xf32>
    %cst_34 = arith.constant 0.000000e+00 : f32
    %53 = vector.broadcast %cst_34 : f32 to vector<1x32xf32>
    %54 = arith.cmpf oge, %48, %53 : vector<1x32xf32>
    %cst_35 = arith.constant 1.000000e+00 : f32
    %55 = vector.broadcast %cst_35 : f32 to vector<1x32xf32>
    %56 = arith.addf %55, %51 : vector<1x32xf32>
    %cst_36 = arith.constant 1.000000e+00 : f32
    %57 = vector.broadcast %cst_36 : f32 to vector<1x32xf32>
    %58 = arith.divf %57, %56 : vector<1x32xf32>
    %cst_37 = arith.constant 1.000000e+00 : f32
    %59 = vector.broadcast %cst_37 : f32 to vector<1x32xf32>
    %60 = arith.addf %59, %52 : vector<1x32xf32>
    %61 = arith.divf %52, %60 : vector<1x32xf32>
    %62 = arith.select %54, %58, %61 : vector<1x32xi1>, vector<1x32xf32>
    %c0_38 = arith.constant 0 : index
    %c0_39 = arith.constant 0 : index
    %63 = vector.load %arg14[%c0_38, %c0_39] : memref<1x32xf32, #tpu.memory_space<vmem>>, vector<1x32xf32>
    tpu.vector_store %arg14[%c0_38, %c0_39], %62 {strides = array<i32>} : memref<1x32xf32, #tpu.memory_space<vmem>>, vector<1x32xf32>,
    return
  }
  func.func @transform_0(%arg0: i32) -> (i32, i32) {
    %c0_i32 = arith.constant 0 : i32
    %c0_i32_0 = arith.constant 0 : i32
    %c0_i32_1 = arith.constant 0 : i32
    return %c0_i32, %c0_i32_0 : i32, i32
  }
  func.func @transform_1(%arg0: i32) -> (i32, i32) {
    %c0_i32 = arith.constant 0 : i32
    %c0_i32_0 = arith.constant 0 : i32
    %c0_i32_1 = arith.constant 0 : i32
    return %c0_i32, %c0_i32_0 : i32, i32
  }
  func.func @transform_2(%arg0: i32) -> (i32, i32) {
    %c0_i32 = arith.constant 0 : i32
    %c0_i32_0 = arith.constant 0 : i32
    %c0_i32_1 = arith.constant 0 : i32
    return %c0_i32, %c0_i32_0 : i32, i32
  }
  func.func @transform_3(%arg0: i32) -> (i32, i32) {
    %c0_i32 = arith.constant 0 : i32
    %c0_i32_0 = arith.constant 0 : i32
    %c0_i32_1 = arith.constant 0 : i32
    return %c0_i32, %c0_i32_0 : i32, i32
  }
  func.func @transform_4(%arg0: i32) -> (i32, i32) {
    %c0_i32 = arith.constant 0 : i32
    %c0_i32_0 = arith.constant 0 : i32
    %c0_i32_1 = arith.constant 0 : i32
    return %c0_i32, %c0_i32_0 : i32, i32
  }
  func.func @transform_5(%arg0: i32) -> (i32, i32) {
    %c0_i32 = arith.constant 0 : i32
    %c0_i32_0 = arith.constant 0 : i32
    %c0_i32_1 = arith.constant 0 : i32
    return %c0_i32, %c0_i32_0 : i32, i32
  }
  func.func @transform_6(%arg0: i32) -> (i32, i32) {
    %c0_i32 = arith.constant 0 : i32
    %c0_i32_0 = arith.constant 0 : i32
    %c0_i32_1 = arith.constant 0 : i32
    return %c0_i32, %c0_i32_0 : i32, i32
  }
  func.func @transform_7(%arg0: i32) -> (i32, i32) {
    %c0_i32 = arith.constant 0 : i32
    %c0_i32_0 = arith.constant 0 : i32
    %c0_i32_1 = arith.constant 0 : i32
    return %c0_i32, %c0_i32_0 : i32, i32
  }
  func.func @transform_8(%arg0: i32) -> (i32, i32) {
    %c0_i32 = arith.constant 0 : i32
    %c0_i32_0 = arith.constant 0 : i32
    %c0_i32_1 = arith.constant 0 : i32
    return %c0_i32, %c0_i32_0 : i32, i32
  }
  func.func @transform_9(%arg0: i32) -> (i32, i32) {
    %c0_i32 = arith.constant 0 : i32
    %c0_i32_0 = arith.constant 0 : i32
    %c0_i32_1 = arith.constant 0 : i32
    return %c0_i32, %c0_i32_0 : i32, i32
  }
  func.func @transform_10(%arg0: i32) -> (i32, i32) {
    %c0_i32 = arith.constant 0 : i32
    %c0_i32_0 = arith.constant 0 : i32
    %c0_i32_1 = arith.constant 0 : i32
    return %c0_i32, %c0_i32_0 : i32, i32
  }
  func.func @transform_11(%arg0: i32) -> (i32, i32) {
    %c0_i32 = arith.constant 0 : i32
    %c0_i32_0 = arith.constant 0 : i32
    %c0_i32_1 = arith.constant 0 : i32
    return %c0_i32, %c0_i32_0 : i32, i32
  }
  func.func @transform_12(%arg0: i32) -> (i32, i32) {
    %c0_i32 = arith.constant 0 : i32
    %c0_i32_0 = arith.constant 0 : i32
    %c0_i32_1 = arith.constant 0 : i32
    return %c0_i32, %c0_i32_0 : i32, i32
  }
  func.func @transform_13(%arg0: i32) -> (i32, i32) {
    %c0_i32 = arith.constant 0 : i32
    %c0_i32_0 = arith.constant 0 : i32
    %c0_i32_1 = arith.constant 0 : i32
    return %c0_i32, %c0_i32_0 : i32, i32
  }
}

</mosaic_0001>

<llo_original>
// kernel: model3_forward.1
$region0: #{model3_forward.1}
  #allocation0 [shape = 'u32[]', space=smem, size = 0x4, offset = 0x4, fixed_abs, tag = 'smem constant byte address 0x4 - core index']
  #allocation1 [shape = 'u32[144,128]{1,0:T(1,128)}', space=vmem, size = 0x12000, scoped, tag = 'internal scratch']
  #allocation2 [shape = 'f32[1,1]{1,0:T(1,128)S(1)}', space=vmem, size = 0x200, scoped, tag = 'scoped memory for model3_forward.1']
  %s0 = inlined_call_operand.vmem [shape: bf16[256,16], index: 0, kind: input, shape index: {}]
  %s1 = inlined_call_operand.vmem [shape: bf16[256,256], index: 1, kind: input, shape index: {}]
  %s2 = inlined_call_operand.vmem [shape: bf16[256,32], index: 2, kind: input, shape index: {}]
  %s3 = inlined_call_operand.vmem [shape: bf16[128,32], index: 3, kind: input, shape index: {}]
  %s4 = inlined_call_operand.vmem [shape: bf16[16,32], index: 4, kind: input, shape index: {}]
  %s5 = inlined_call_operand.vmem [shape: bf16[32,32], index: 5, kind: input, shape index: {}]
  %s6 = inlined_call_operand.vmem [shape: f32[1,32], index: 6, kind: input, shape index: {}]
  %s7 = inlined_call_operand.vmem [shape: f32[1,32], index: 7, kind: input, shape index: {}]
  %s8 = inlined_call_operand.vmem [shape: f32[1,32], index: 8, kind: input, shape index: {}]
  %s9 = inlined_call_operand.vmem [shape: f32[1,32], index: 9, kind: input, shape index: {}]
  %s10 = inlined_call_operand.vmem [shape: f32[1,32], index: 10, kind: input, shape index: {}]
  %s11 = inlined_call_operand.vmem [shape: f32[128,1], index: 11, kind: input, shape index: {}]
  %s12 = inlined_call_operand.<no memory space> [shape: f32[1,1], index: 12, kind: input, shape index: {}]
  %s13 = inlined_call_operand.hbm [shape: f32[1,32], index: 13, kind: output, shape index: {}]
  %s14 = sld [smem:[#allocation0]]
  $region62: #{model3_forward.1} parent=0
    _
  %s16 = ssub.s32 1, %s14
  %s17 = scalar_select 0, %s16, %s14
  %v18 = vstv %s12
  %19 = vst [vmem:[#allocation2] sm:$0x1] %v18
  $region1: #{model3_forward.1} parent=0
    #allocation3 [shape = 'u8[512]{0}', space=vmem, size = 0x400, scoped, tag = 'output window, operand 0, single buffered']
    #allocation4 [shape = 's32[1]{0}', space=sflag, size = 0x4, scoped, tag = 'scoped memory for model3_forward.1']
    %20 = vsyncpa [#allocation4], 0
    // Predicated region
    $region2: #{model3_forward.1} parent=1 // pred_check
      _
    $region3: #{model3_forward.1} parent=1 // pred_check_branch
      %22 = sbr.rel (0) target = $region5
    $region4: #{model3_forward.1} parent=1 // pred_region
      _
    $region5: #{model3_forward.1} parent=1 // pred_fallthru
      _
    // Predicated region
    $region6: #{model3_forward.1} parent=1 // pred_check
      _
    $region7: #{model3_forward.1} parent=1 // pred_check_branch
      %24 = sbr.rel (0) target = $region9
    $region8: #{model3_forward.1} parent=1 // pred_region
      _
    $region9: #{model3_forward.1} parent=1 // pred_fallthru
      _
    // Predicated region
    $region10: #{model3_forward.1} parent=1 // pred_check
      _
    $region11: #{model3_forward.1} parent=1 // pred_check_branch
      %26 = sbr.rel (0) target = $region13
    $region12: #{model3_forward.1} parent=1 // pred_region
      _
    $region13: #{model3_forward.1} parent=1 // pred_fallthru
      _
    // Predicated region
    $region14: #{model3_forward.1} parent=1 // pred_check
      _
    $region15: #{model3_forward.1} parent=1 // pred_check_branch
      %28 = sbr.rel (0) target = $region17
    $region16: #{model3_forward.1} parent=1 // pred_region
      _
    $region17: #{model3_forward.1} parent=1 // pred_fallthru
      _
    // Predicated region
    $region18: #{model3_forward.1} parent=1 // pred_check
      _
    $region19: #{model3_forward.1} parent=1 // pred_check_branch
      %30 = sbr.rel (0) target = $region21
    $region20: #{model3_forward.1} parent=1 // pred_region
      _
    $region21: #{model3_forward.1} parent=1 // pred_fallthru
      _
    // Predicated region
    $region22: #{model3_forward.1} parent=1 // pred_check
      _
    $region23: #{model3_forward.1} parent=1 // pred_check_branch
      %32 = sbr.rel (0) target = $region25
    $region24: #{model3_forward.1} parent=1 // pred_region
      _
    $region25: #{model3_forward.1} parent=1 // pred_fallthru
      _
    // Predicated region
    $region26: #{model3_forward.1} parent=1 // pred_check
      _
    $region27: #{model3_forward.1} parent=1 // pred_check_branch
      %34 = sbr.rel (0) target = $region29
    $region28: #{model3_forward.1} parent=1 // pred_region
      _
    $region29: #{model3_forward.1} parent=1 // pred_fallthru
      _
    // Predicated region
    $region30: #{model3_forward.1} parent=1 // pred_check
      _
    $region31: #{model3_forward.1} parent=1 // pred_check_branch
      %36 = sbr.rel (0) target = $region33
    $region32: #{model3_forward.1} parent=1 // pred_region
      _
    $region33: #{model3_forward.1} parent=1 // pred_fallthru
      _
    // Predicated region
    $region34: #{model3_forward.1} parent=1 // pred_check
      _
    $region35: #{model3_forward.1} parent=1 // pred_check_branch
      %38 = sbr.rel (0) target = $region37
    $region36: #{model3_forward.1} parent=1 // pred_region
      _
    $region37: #{model3_forward.1} parent=1 // pred_fallthru
      _
    // Predicated region
    $region38: #{model3_forward.1} parent=1 // pred_check
      _
    $region39: #{model3_forward.1} parent=1 // pred_check_branch
      %40 = sbr.rel (0) target = $region41
    $region40: #{model3_forward.1} parent=1 // pred_region
      _
    $region41: #{model3_forward.1} parent=1 // pred_fallthru
      _
    // Predicated region
    $region42: #{model3_forward.1} parent=1 // pred_check
      _
    $region43: #{model3_forward.1} parent=1 // pred_check_branch
      %42 = sbr.rel (0) target = $region45
    $region44: #{model3_forward.1} parent=1 // pred_region
      _
    $region45: #{model3_forward.1} parent=1 // pred_fallthru
      _
    // Predicated region
    $region46: #{model3_forward.1} parent=1 // pred_check
      _
    $region47: #{model3_forward.1} parent=1 // pred_check_branch
      %44 = sbr.rel (0) target = $region49
    $region48: #{model3_forward.1} parent=1 // pred_region
      _
    $region49: #{model3_forward.1} parent=1 // pred_fallthru
      _
    // Predicated region
    $region50: #{model3_forward.1} parent=1 // pred_check
      _
    $region51: #{model3_forward.1} parent=1 // pred_check_branch
      %46 = sbr.rel (0) target = $region53
    $region52: #{model3_forward.1} parent=1 // pred_region
      _
    $region53: #{model3_forward.1} parent=1 // pred_fallthru
      _
    %v48 = vld [vmem:[%s0] sm:$0xf]
    %v49 = vld [vmem:[%s0 + $0x4] sm:$0xf]
    %v50 = vld [vmem:[%s0 + $0x8] sm:$0xf]
    %v51 = vld [vmem:[%s0 + $0xc] sm:$0xf]
    %v52 = vld [vmem:[%s0 + $0x10] sm:$0xf]
    %v53 = vld [vmem:[%s0 + $0x14] sm:$0xf]
    %v54 = vld [vmem:[%s0 + $0x18] sm:$0xf]
    %v55 = vld [vmem:[%s0 + $0x1c] sm:$0xf]
    %v56 = vld [vmem:[%s0 + $0x20] sm:$0xf]
    %v57 = vld [vmem:[%s0 + $0x24] sm:$0xf]
    %v58 = vld [vmem:[%s0 + $0x28] sm:$0xf]
    %v59 = vld [vmem:[%s0 + $0x2c] sm:$0xf]
    %v60 = vld [vmem:[%s0 + $0x30] sm:$0xf]
    %v61 = vld [vmem:[%s0 + $0x34] sm:$0xf]
    %v62 = vld [vmem:[%s0 + $0x38] sm:$0xf]
    %v63 = vld [vmem:[%s0 + $0x3c] sm:$0xf]
    %v64 = vld [vmem:[%s0 + $0x40] sm:$0xf]
    %v65 = vld [vmem:[%s0 + $0x44] sm:$0xf]
    %v66 = vld [vmem:[%s0 + $0x48] sm:$0xf]
    %v67 = vld [vmem:[%s0 + $0x4c] sm:$0xf]
    %v68 = vld [vmem:[%s0 + $0x50] sm:$0xf]
    %v69 = vld [vmem:[%s0 + $0x54] sm:$0xf]
    %v70 = vld [vmem:[%s0 + $0x58] sm:$0xf]
    %v71 = vld [vmem:[%s0 + $0x5c] sm:$0xf]
    %v72 = vld [vmem:[%s0 + $0x60] sm:$0xf]
    %v73 = vld [vmem:[%s0 + $0x64] sm:$0xf]
    %v74 = vld [vmem:[%s0 + $0x68] sm:$0xf]
    %v75 = vld [vmem:[%s0 + $0x6c] sm:$0xf]
    %v76 = vld [vmem:[%s0 + $0x70] sm:$0xf]
    %v77 = vld [vmem:[%s0 + $0x74] sm:$0xf]
    %v78 = vld [vmem:[%s0 + $0x78] sm:$0xf]
    %v79 = vld [vmem:[%s0 + $0x7c] sm:$0xf]
    %v80 = vld [vmem:[%s1] sm:$0xff]
    %v81 = vld [vmem:[%s1 + $0x8] sm:$0xff]
    %v82 = vld [vmem:[%s1 + $0x10] sm:$0xff]
    %v83 = vld [vmem:[%s1 + $0x18] sm:$0xff]
    %v84 = vld [vmem:[%s1 + $0x20] sm:$0xff]
    %v85 = vld [vmem:[%s1 + $0x28] sm:$0xff]
    %v86 = vld [vmem:[%s1 + $0x30] sm:$0xff]
    %v87 = vld [vmem:[%s1 + $0x38] sm:$0xff]
    %v88 = vld [vmem:[%s1 + $0x40] sm:$0xff]
    %v89 = vld [vmem:[%s1 + $0x48] sm:$0xff]
    %v90 = vld [vmem:[%s1 + $0x50] sm:$0xff]
    %v91 = vld [vmem:[%s1 + $0x58] sm:$0xff]
    %v92 = vld [vmem:[%s1 + $0x60] sm:$0xff]
    %v93 = vld [vmem:[%s1 + $0x68] sm:$0xff]
    %v94 = vld [vmem:[%s1 + $0x70] sm:$0xff]
    %v95 = vld [vmem:[%s1 + $0x78] sm:$0xff]
    %v96 = vld [vmem:[%s1 + $0x80] sm:$0xff]
    %v97 = vld [vmem:[%s1 + $0x88] sm:$0xff]
    %v98 = vld [vmem:[%s1 + $0x90] sm:$0xff]
    %v99 = vld [vmem:[%s1 + $0x98] sm:$0xff]
    %v100 = vld [vmem:[%s1 + $0xa0] sm:$0xff]
    %v101 = vld [vmem:[%s1 + $0xa8] sm:$0xff]
    %v102 = vld [vmem:[%s1 + $0xb0] sm:$0xff]
    %v103 = vld [vmem:[%s1 + $0xb8] sm:$0xff]
    %v104 = vld [vmem:[%s1 + $0xc0] sm:$0xff]
    %v105 = vld [vmem:[%s1 + $0xc8] sm:$0xff]
    %v106 = vld [vmem:[%s1 + $0xd0] sm:$0xff]
    %v107 = vld [vmem:[%s1 + $0xd8] sm:$0xff]
    %v108 = vld [vmem:[%s1 + $0xe0] sm:$0xff]
    %v109 = vld [vmem:[%s1 + $0xe8] sm:$0xff]
    %v110 = vld [vmem:[%s1 + $0xf0] sm:$0xff]
    %v111 = vld [vmem:[%s1 + $0xf8] sm:$0xff]
    %v112 = vld [vmem:[%s4] sm:$0xf]
    %v113 = vld [vmem:[%s4 + $0x4] sm:$0xf]
    %v146 = vunpack.c.l.b16 %v48
    %v147 = vunpack.c.l.b16 %v49
    %v148 = vunpack.c.l.b16 %v50
    %v149 = vunpack.c.l.b16 %v51
    %v150 = vunpack.c.l.b16 %v52
    %v151 = vunpack.c.l.b16 %v53
    %v152 = vunpack.c.l.b16 %v54
    %v153 = vunpack.c.l.b16 %v55
    %v154 = vunpack.c.l.b16 %v56
    %v155 = vunpack.c.l.b16 %v57
    %v156 = vunpack.c.l.b16 %v58
    %v157 = vunpack.c.l.b16 %v59
    %v158 = vunpack.c.l.b16 %v60
    %v159 = vunpack.c.l.b16 %v61
    %v160 = vunpack.c.l.b16 %v62
    %v161 = vunpack.c.l.b16 %v63
    %v162 = vunpack.c.l.b16 %v64
    %v163 = vunpack.c.l.b16 %v65
    %v164 = vunpack.c.l.b16 %v66
    %v165 = vunpack.c.l.b16 %v67
    %v166 = vunpack.c.l.b16 %v68
    %v167 = vunpack.c.l.b16 %v69
    %v168 = vunpack.c.l.b16 %v70
    %v169 = vunpack.c.l.b16 %v71
    %v170 = vunpack.c.l.b16 %v72
    %v171 = vunpack.c.l.b16 %v73
    %v172 = vunpack.c.l.b16 %v74
    %v173 = vunpack.c.l.b16 %v75
    %v174 = vunpack.c.l.b16 %v76
    %v175 = vunpack.c.l.b16 %v77
    %v176 = vunpack.c.l.b16 %v78
    %v177 = vunpack.c.l.b16 %v79
    %v178 = vpack.c.b16 %v147, %v146
    %v179 = vpack.c.b16 %v149, %v148
    %v180 = vpack.c.b16 %v151, %v150
    %v181 = vpack.c.b16 %v153, %v152
    %v182 = vpack.c.b16 %v155, %v154
    %v183 = vpack.c.b16 %v157, %v156
    %v184 = vpack.c.b16 %v159, %v158
    %v185 = vpack.c.b16 %v161, %v160
    %v186 = vpack.c.b16 %v163, %v162
    %v187 = vpack.c.b16 %v165, %v164
    %v188 = vpack.c.b16 %v167, %v166
    %v189 = vpack.c.b16 %v169, %v168
    %v190 = vpack.c.b16 %v171, %v170
    %v191 = vpack.c.b16 %v173, %v172
    %v192 = vpack.c.b16 %v175, %v174
    %v193 = vpack.c.b16 %v177, %v176
    %v196 = vunpack.c.l.b16 %v112
    %v197 = vunpack.c.l.b16 %v113
    %v198 = vpack.c.b16 %v197, %v196
    %vm200 = vcmask 130048
    %v202 = vsel %vm200, %v178, 0
    %v205 = vsel %vm200, %v179, 0
    %v208 = vsel %vm200, %v180, 0
    %v211 = vsel %vm200, %v181, 0
    %v214 = vsel %vm200, %v182, 0
    %v217 = vsel %vm200, %v183, 0
    %v220 = vsel %vm200, %v184, 0
    %v223 = vsel %vm200, %v185, 0
    %v226 = vsel %vm200, %v186, 0
    %v229 = vsel %vm200, %v187, 0
    %v232 = vsel %vm200, %v188, 0
    %v235 = vsel %vm200, %v189, 0
    %v238 = vsel %vm200, %v190, 0
    %v241 = vsel %vm200, %v191, 0
    %v244 = vsel %vm200, %v192, 0
    %v247 = vsel %vm200, %v193, 0
    %249 = vmatprep.subr.bf16.mxu0 0
    %250 = vmatpush1.bf16.msra.mxu0 %v198
    %251 = vmatprep.subr.bf16.mxu0 0
    %252 = vmatpush1.bf16.msra.mxu0 0
    %253 = vmatprep.subr.bf16.mxu0 0
    %254 = vmatpush1.bf16.msra.mxu0 0
    %255 = vmatprep.subr.bf16.mxu0 0
    %256 = vmatpush1.bf16.msra.mxu0 0
    %257 = vmatprep.subr.bf16.mxu0 0
    %258 = vmatpush1.bf16.msra.mxu0 0
    %259 = vmatprep.subr.bf16.mxu0 0
    %260 = vmatpush1.bf16.msra.mxu0 0
    %261 = vmatprep.subr.bf16.mxu0 0
    %262 = vmatpush1.bf16.msra.mxu0 0
    %263 = vmatprep.subr.bf16.mxu0 0
    %264 = vmatpush1.bf16.msra.mxu0 0
    %265 = vmatprep.subr.bf16.mxu0 0
    %266 = vmatpush1.bf16.msra.mxu0 0
    %267 = vmatprep.subr.bf16.mxu0 0
    %268 = vmatpush1.bf16.msra.mxu0 0
    %269 = vmatprep.subr.bf16.mxu0 0
    %270 = vmatpush1.bf16.msra.mxu0 0
    %271 = vmatprep.subr.bf16.mxu0 0
    %272 = vmatpush1.bf16.msra.mxu0 0
    %273 = vmatprep.subr.bf16.mxu0 0
    %274 = vmatpush1.bf16.msra.mxu0 0
    %275 = vmatprep.subr.bf16.mxu0 0
    %276 = vmatpush1.bf16.msra.mxu0 0
    %277 = vmatprep.subr.bf16.mxu0 0
    %278 = vmatpush1.bf16.msra.mxu0 0
    %279 = vmatprep.subr.bf16.mxu0 0
    %280 = vmatpush1.bf16.msra.mxu0 0
    %281 = vmatprep.mubr.bf16.mxu0 0
    %282 = vmatmul.mubr.bf16.gmra.mrb[0].mxu0 %v202
    %v283 = vpop.f32.mrb[0].mxu0
    %v284 = vadd.f32 0.0, %v283
    %v285 = vpop.f32.mrb[0].mxu0
    %v286 = vpop.f32.mrb[0].mxu0
    %v287 = vadd.f32 0.0, %v286
    %v288 = vpop.f32.mrb[0].mxu0
    %289 = vmatprep.mubr.bf16.mxu0 0
    %290 = vmatmul.mubr.bf16.gmra.mrb[0].mxu0 %v205
    %v291 = vpop.f32.mrb[0].mxu0
    %v292 = vadd.f32 0.0, %v291
    %v293 = vpop.f32.mrb[0].mxu0
    %v294 = vpop.f32.mrb[0].mxu0
    %v295 = vadd.f32 0.0, %v294
    %v296 = vpop.f32.mrb[0].mxu0
    %297 = vmatprep.mubr.bf16.mxu0 0
    %298 = vmatmul.mubr.bf16.gmra.mrb[0].mxu0 %v208
    %v299 = vpop.f32.mrb[0].mxu0
    %v300 = vadd.f32 0.0, %v299
    %v301 = vpop.f32.mrb[0].mxu0
    %v302 = vpop.f32.mrb[0].mxu0
    %v303 = vadd.f32 0.0, %v302
    %v304 = vpop.f32.mrb[0].mxu0
    %305 = vmatprep.mubr.bf16.mxu0 0
    %306 = vmatmul.mubr.bf16.gmra.mrb[0].mxu0 %v211
    %v307 = vpop.f32.mrb[0].mxu0
    %v308 = vadd.f32 0.0, %v307
    %v309 = vpop.f32.mrb[0].mxu0
    %v310 = vpop.f32.mrb[0].mxu0
    %v311 = vadd.f32 0.0, %v310
    %v312 = vpop.f32.mrb[0].mxu0
    %313 = vmatprep.mubr.bf16.mxu0 0
    %314 = vmatmul.mubr.bf16.gmra.mrb[0].mxu0 %v214
    %v315 = vpop.f32.mrb[0].mxu0
    %v316 = vadd.f32 0.0, %v315
    %v317 = vpop.f32.mrb[0].mxu0
    %v318 = vpop.f32.mrb[0].mxu0
    %v319 = vadd.f32 0.0, %v318
    %v320 = vpop.f32.mrb[0].mxu0
    %321 = vmatprep.mubr.bf16.mxu0 0
    %322 = vmatmul.mubr.bf16.gmra.mrb[0].mxu0 %v217
    %v323 = vpop.f32.mrb[0].mxu0
    %v324 = vadd.f32 0.0, %v323
    %v325 = vpop.f32.mrb[0].mxu0
    %v326 = vpop.f32.mrb[0].mxu0
    %v327 = vadd.f32 0.0, %v326
    %v328 = vpop.f32.mrb[0].mxu0
    %329 = vmatprep.mubr.bf16.mxu0 0
    %330 = vmatmul.mubr.bf16.gmra.mrb[0].mxu0 %v220
    %v331 = vpop.f32.mrb[0].mxu0
    %v332 = vadd.f32 0.0, %v331
    %v333 = vpop.f32.mrb[0].mxu0
    %v334 = vpop.f32.mrb[0].mxu0
    %v335 = vadd.f32 0.0, %v334
    %v336 = vpop.f32.mrb[0].mxu0
    %337 = vmatprep.mubr.bf16.mxu0 0
    %338 = vmatmul.mubr.bf16.gmra.mrb[0].mxu0 %v223
    %v339 = vpop.f32.mrb[0].mxu0
    %v340 = vadd.f32 0.0, %v339
    %v341 = vpop.f32.mrb[0].mxu0
    %v342 = vpop.f32.mrb[0].mxu0
    %v343 = vadd.f32 0.0, %v342
    %v344 = vpop.f32.mrb[0].mxu0
    %345 = vmatprep.mubr.bf16.mxu0 0
    %346 = vmatmul.mubr.bf16.gmra.mrb[0].mxu0 %v226
    %v347 = vpop.f32.mrb[0].mxu0
    %v348 = vadd.f32 0.0, %v347
    %v349 = vpop.f32.mrb[0].mxu0
    %v350 = vpop.f32.mrb[0].mxu0
    %v351 = vadd.f32 0.0, %v350
    %v352 = vpop.f32.mrb[0].mxu0
    %353 = vmatprep.mubr.bf16.mxu0 0
    %354 = vmatmul.mubr.bf16.gmra.mrb[0].mxu0 %v229
    %v355 = vpop.f32.mrb[0].mxu0
    %v356 = vadd.f32 0.0, %v355
    %v357 = vpop.f32.mrb[0].mxu0
    %v358 = vpop.f32.mrb[0].mxu0
    %v359 = vadd.f32 0.0, %v358
    %v360 = vpop.f32.mrb[0].mxu0
    %361 = vmatprep.mubr.bf16.mxu0 0
    %362 = vmatmul.mubr.bf16.gmra.mrb[0].mxu0 %v232
    %v363 = vpop.f32.mrb[0].mxu0
    %v364 = vadd.f32 0.0, %v363
    %v365 = vpop.f32.mrb[0].mxu0
    %v366 = vpop.f32.mrb[0].mxu0
    %v367 = vadd.f32 0.0, %v366
    %v368 = vpop.f32.mrb[0].mxu0
    %369 = vmatprep.mubr.bf16.mxu0 0
    %370 = vmatmul.mubr.bf16.gmra.mrb[0].mxu0 %v235
    %v371 = vpop.f32.mrb[0].mxu0
    %v372 = vadd.f32 0.0, %v371
    %v373 = vpop.f32.mrb[0].mxu0
    %v374 = vpop.f32.mrb[0].mxu0
    %v375 = vadd.f32 0.0, %v374
    %v376 = vpop.f32.mrb[0].mxu0
    %377 = vmatprep.mubr.bf16.mxu0 0
    %378 = vmatmul.mubr.bf16.gmra.mrb[0].mxu0 %v238
    %v379 = vpop.f32.mrb[0].mxu0
    %v380 = vadd.f32 0.0, %v379
    %v381 = vpop.f32.mrb[0].mxu0
    %v382 = vpop.f32.mrb[0].mxu0
    %v383 = vadd.f32 0.0, %v382
    %v384 = vpop.f32.mrb[0].mxu0
    %385 = vmatprep.mubr.bf16.mxu0 0
    %386 = vmatmul.mubr.bf16.gmra.mrb[0].mxu0 %v241
    %v387 = vpop.f32.mrb[0].mxu0
    %v388 = vadd.f32 0.0, %v387
    %v389 = vpop.f32.mrb[0].mxu0
    %v390 = vpop.f32.mrb[0].mxu0
    %v391 = vadd.f32 0.0, %v390
    %v392 = vpop.f32.mrb[0].mxu0
    %393 = vmatprep.mubr.bf16.mxu0 0
    %394 = vmatmul.mubr.bf16.gmra.mrb[0].mxu0 %v244
    %v395 = vpop.f32.mrb[0].mxu0
    %v396 = vadd.f32 0.0, %v395
    %v397 = vpop.f32.mrb[0].mxu0
    %v398 = vpop.f32.mrb[0].mxu0
    %v399 = vadd.f32 0.0, %v398
    %v400 = vpop.f32.mrb[0].mxu0
    %401 = vmatprep.mubr.bf16.mxu0 0
    %402 = vmatmul.mubr.bf16.gmra.mrb[0].mxu0 %v247
    %v403 = vpop.f32.mrb[0].mxu0
    %v404 = vadd.f32 0.0, %v403
    %v405 = vpop.f32.mrb[0].mxu0
    %v406 = vpop.f32.mrb[0].mxu0
    %v407 = vadd.f32 0.0, %v406
    %v408 = vpop.f32.mrb[0].mxu0
    %409 = vdwg.mxu0
    %v410 = vpack.c.bf16 %v287, %v284
    %v411 = vpack.c.bf16 %v295, %v292
    %v412 = vpack.c.bf16 %v303, %v300
    %v413 = vpack.c.bf16 %v311, %v308
    %v414 = vpack.c.bf16 %v319, %v316
    %v415 = vpack.c.bf16 %v327, %v324
    %v416 = vpack.c.bf16 %v335, %v332
    %v417 = vpack.c.bf16 %v343, %v340
    %v418 = vpack.c.bf16 %v351, %v348
    %v419 = vpack.c.bf16 %v359, %v356
    %v420 = vpack.c.bf16 %v367, %v364
    %v421 = vpack.c.bf16 %v375, %v372
    %v422 = vpack.c.bf16 %v383, %v380
    %v423 = vpack.c.bf16 %v391, %v388
    %v424 = vpack.c.bf16 %v399, %v396
    %v425 = vpack.c.bf16 %v407, %v404
    %v458 = vunpack.c.l.b16 %v80
    %v459 = vunpack.c.h.b16 %v80
    %v460 = vunpack.c.l.b16 %v81
    %v461 = vunpack.c.h.b16 %v81
    %v462 = vunpack.c.l.b16 %v82
    %v463 = vunpack.c.h.b16 %v82
    %v464 = vunpack.c.l.b16 %v83
    %v465 = vunpack.c.h.b16 %v83
    %v466 = vunpack.c.l.b16 %v84
    %v467 = vunpack.c.h.b16 %v84
    %v468 = vunpack.c.l.b16 %v85
    %v469 = vunpack.c.h.b16 %v85
    %v470 = vunpack.c.l.b16 %v86
    %v471 = vunpack.c.h.b16 %v86
    %v472 = vunpack.c.l.b16 %v87
    %v473 = vunpack.c.h.b16 %v87
    %v474 = vunpack.c.l.b16 %v88
    %v475 = vunpack.c.h.b16 %v88
    %v476 = vunpack.c.l.b16 %v89
    %v477 = vunpack.c.h.b16 %v89
    %v478 = vunpack.c.l.b16 %v90
    %v479 = vunpack.c.h.b16 %v90
    %v480 = vunpack.c.l.b16 %v91
    %v481 = vunpack.c.h.b16 %v91
    %v482 = vunpack.c.l.b16 %v92
    %v483 = vunpack.c.h.b16 %v92
    %v484 = vunpack.c.l.b16 %v93
    %v485 = vunpack.c.h.b16 %v93
    %v486 = vunpack.c.l.b16 %v94
    %v487 = vunpack.c.h.b16 %v94
    %v488 = vunpack.c.l.b16 %v95
    %v489 = vunpack.c.h.b16 %v95
    %v490 = vunpack.c.l.b16 %v96
    %v491 = vunpack.c.h.b16 %v96
    %v492 = vunpack.c.l.b16 %v97
    %v493 = vunpack.c.h.b16 %v97
    %v494 = vunpack.c.l.b16 %v98
    %v495 = vunpack.c.h.b16 %v98
    %v496 = vunpack.c.l.b16 %v99
    %v497 = vunpack.c.h.b16 %v99
    %v498 = vunpack.c.l.b16 %v100
    %v499 = vunpack.c.h.b16 %v100
    %v500 = vunpack.c.l.b16 %v101
    %v501 = vunpack.c.h.b16 %v101
    %v502 = vunpack.c.l.b16 %v102
    %v503 = vunpack.c.h.b16 %v102
    %v504 = vunpack.c.l.b16 %v103
    %v505 = vunpack.c.h.b16 %v103
    %v506 = vunpack.c.l.b16 %v104
    %v507 = vunpack.c.h.b16 %v104
    %v508 = vunpack.c.l.b16 %v105
    %v509 = vunpack.c.h.b16 %v105
    %v510 = vunpack.c.l.b16 %v106
    %v511 = vunpack.c.h.b16 %v106
    %v512 = vunpack.c.l.b16 %v107
    %v513 = vunpack.c.h.b16 %v107
    %v514 = vunpack.c.l.b16 %v108
    %v515 = vunpack.c.h.b16 %v108
    %v516 = vunpack.c.l.b16 %v109
    %v517 = vunpack.c.h.b16 %v109
    %v518 = vunpack.c.l.b16 %v110
    %v519 = vunpack.c.h.b16 %v110
    %v520 = vunpack.c.l.b16 %v111
    %v521 = vunpack.c.h.b16 %v111
    %v522 = vpack.c.b16 %v460, %v458
    %v523 = vpack.c.b16 %v461, %v459
    %v524 = vpack.c.b16 %v464, %v462
    %v525 = vpack.c.b16 %v465, %v463
    %v526 = vpack.c.b16 %v468, %v466
    %v527 = vpack.c.b16 %v469, %v467
    %v528 = vpack.c.b16 %v472, %v470
    %v529 = vpack.c.b16 %v473, %v471
    %v530 = vpack.c.b16 %v476, %v474
    %v531 = vpack.c.b16 %v477, %v475
    %v532 = vpack.c.b16 %v480, %v478
    %v533 = vpack.c.b16 %v481, %v479
    %v534 = vpack.c.b16 %v484, %v482
    %v535 = vpack.c.b16 %v485, %v483
    %v536 = vpack.c.b16 %v488, %v486
    %v537 = vpack.c.b16 %v489, %v487
    %v538 = vpack.c.b16 %v492, %v490
    %v539 = vpack.c.b16 %v493, %v491
    %v540 = vpack.c.b16 %v496, %v494
    %v541 = vpack.c.b16 %v497, %v495
    %v542 = vpack.c.b16 %v500, %v498
    %v543 = vpack.c.b16 %v501, %v499
    %v544 = vpack.c.b16 %v504, %v502
    %v545 = vpack.c.b16 %v505, %v503
    %v546 = vpack.c.b16 %v508, %v506
    %v547 = vpack.c.b16 %v509, %v507
    %v548 = vpack.c.b16 %v512, %v510
    %v549 = vpack.c.b16 %v513, %v511
    %v550 = vpack.c.b16 %v516, %v514
    %v551 = vpack.c.b16 %v517, %v515
    %v552 = vpack.c.b16 %v520, %v518
    %v553 = vpack.c.b16 %v521, %v519
    %586 = vmatprep.subr.bf16.mxu0 0
    %587 = vmatpush1.bf16.msra.mxu0 %v410
    %588 = vmatprep.subr.bf16.mxu0 0
    %589 = vmatpush1.bf16.msra.mxu0 %v411
    %590 = vmatprep.subr.bf16.mxu0 0
    %591 = vmatpush1.bf16.msra.mxu0 %v412
    %592 = vmatprep.subr.bf16.mxu0 0
    %593 = vmatpush1.bf16.msra.mxu0 %v413
    %594 = vmatprep.subr.bf16.mxu0 0
    %595 = vmatpush1.bf16.msra.mxu0 %v414
    %596 = vmatprep.subr.bf16.mxu0 0
    %597 = vmatpush1.bf16.msra.mxu0 %v415
    %598 = vmatprep.subr.bf16.mxu0 0
    %599 = vmatpush1.bf16.msra.mxu0 %v416
    %600 = vmatprep.subr.bf16.mxu0 0
    %601 = vmatpush1.bf16.msra.mxu0 %v417
    %602 = vmatprep.subr.bf16.mxu0 0
    %603 = vmatpush1.bf16.msra.mxu0 %v418
    %604 = vmatprep.subr.bf16.mxu0 0
    %605 = vmatpush1.bf16.msra.mxu0 %v419
    %606 = vmatprep.subr.bf16.mxu0 0
    %607 = vmatpush1.bf16.msra.mxu0 %v420
    %608 = vmatprep.subr.bf16.mxu0 0
    %609 = vmatpush1.bf16.msra.mxu0 %v421
    %610 = vmatprep.subr.bf16.mxu0 0
    %611 = vmatpush1.bf16.msra.mxu0 %v422
    %612 = vmatprep.subr.bf16.mxu0 0
    %613 = vmatpush1.bf16.msra.mxu0 %v423
    %614 = vmatprep.subr.bf16.mxu0 0
    %615 = vmatpush1.bf16.msra.mxu0 %v424
    %616 = vmatprep.subr.bf16.mxu0 0
    %617 = vmatpush1.bf16.msra.mxu0 %v425
    %618 = vmatprep.mubr.bf16.mxu0 %v523
    %619 = vmatmul.mubr.bf16.gmra.mrb[0].mxu0 %v522
    %v620 = vpop.f32.mrb[0].mxu0
    %v621 = vadd.f32 0.0, %v620
    %v622 = vpop.f32.mrb[0].mxu0
    %v623 = vpop.f32.mrb[0].mxu0
    %v624 = vadd.f32 0.0, %v623
    %v625 = vpop.f32.mrb[0].mxu0
    %626 = vmatprep.mubr.bf16.mxu0 %v525
    %627 = vmatmul.mubr.bf16.gmra.mrb[0].mxu0 %v524
    %v628 = vpop.f32.mrb[0].mxu0
    %v629 = vadd.f32 0.0, %v628
    %v630 = vpop.f32.mrb[0].mxu0
    %v631 = vpop.f32.mrb[0].mxu0
    %v632 = vadd.f32 0.0, %v631
    %v633 = vpop.f32.mrb[0].mxu0
    %634 = vmatprep.mubr.bf16.mxu0 %v527
    %635 = vmatmul.mubr.bf16.gmra.mrb[0].mxu0 %v526
    %v636 = vpop.f32.mrb[0].mxu0
    %v637 = vadd.f32 0.0, %v636
    %v638 = vpop.f32.mrb[0].mxu0
    %v639 = vpop.f32.mrb[0].mxu0
    %v640 = vadd.f32 0.0, %v639
    %v641 = vpop.f32.mrb[0].mxu0
    %642 = vmatprep.mubr.bf16.mxu0 %v529
    %643 = vmatmul.mubr.bf16.gmra.mrb[0].mxu0 %v528
    %v644 = vpop.f32.mrb[0].mxu0
    %v645 = vadd.f32 0.0, %v644
    %v646 = vpop.f32.mrb[0].mxu0
    %v647 = vpop.f32.mrb[0].mxu0
    %v648 = vadd.f32 0.0, %v647
    %v649 = vpop.f32.mrb[0].mxu0
    %650 = vmatprep.mubr.bf16.mxu0 %v531
    %651 = vmatmul.mubr.bf16.gmra.mrb[0].mxu0 %v530
    %v652 = vpop.f32.mrb[0].mxu0
    %v653 = vadd.f32 0.0, %v652
    %v654 = vpop.f32.mrb[0].mxu0
    %v655 = vpop.f32.mrb[0].mxu0
    %v656 = vadd.f32 0.0, %v655
    %v657 = vpop.f32.mrb[0].mxu0
    %658 = vmatprep.mubr.bf16.mxu0 %v533
    %659 = vmatmul.mubr.bf16.gmra.mrb[0].mxu0 %v532
    %v660 = vpop.f32.mrb[0].mxu0
    %v661 = vadd.f32 0.0, %v660
    %v662 = vpop.f32.mrb[0].mxu0
    %v663 = vpop.f32.mrb[0].mxu0
    %v664 = vadd.f32 0.0, %v663
    %v665 = vpop.f32.mrb[0].mxu0
    %666 = vmatprep.mubr.bf16.mxu0 %v535
    %667 = vmatmul.mubr.bf16.gmra.mrb[0].mxu0 %v534
    %v668 = vpop.f32.mrb[0].mxu0
    %v669 = vadd.f32 0.0, %v668
    %v670 = vpop.f32.mrb[0].mxu0
    %v671 = vpop.f32.mrb[0].mxu0
    %v672 = vadd.f32 0.0, %v671
    %v673 = vpop.f32.mrb[0].mxu0
    %674 = vmatprep.mubr.bf16.mxu0 %v537
    %675 = vmatmul.mubr.bf16.gmra.mrb[0].mxu0 %v536
    %v676 = vpop.f32.mrb[0].mxu0
    %v677 = vadd.f32 0.0, %v676
    %v678 = vpop.f32.mrb[0].mxu0
    %v679 = vpop.f32.mrb[0].mxu0
    %v680 = vadd.f32 0.0, %v679
    %v681 = vpop.f32.mrb[0].mxu0
    %682 = vmatprep.mubr.bf16.mxu0 %v539
    %683 = vmatmul.mubr.bf16.gmra.mrb[0].mxu0 %v538
    %v684 = vpop.f32.mrb[0].mxu0
    %v685 = vadd.f32 0.0, %v684
    %v686 = vpop.f32.mrb[0].mxu0
    %v687 = vpop.f32.mrb[0].mxu0
    %v688 = vadd.f32 0.0, %v687
    %v689 = vpop.f32.mrb[0].mxu0
    %690 = vmatprep.mubr.bf16.mxu0 %v541
    %691 = vmatmul.mubr.bf16.gmra.mrb[0].mxu0 %v540
    %v692 = vpop.f32.mrb[0].mxu0
    %v693 = vadd.f32 0.0, %v692
    %v694 = vpop.f32.mrb[0].mxu0
    %v695 = vpop.f32.mrb[0].mxu0
    %v696 = vadd.f32 0.0, %v695
    %v697 = vpop.f32.mrb[0].mxu0
    %698 = vmatprep.mubr.bf16.mxu0 %v543
    %699 = vmatmul.mubr.bf16.gmra.mrb[0].mxu0 %v542
    %v700 = vpop.f32.mrb[0].mxu0
    %v701 = vadd.f32 0.0, %v700
    %v702 = vpop.f32.mrb[0].mxu0
    %v703 = vpop.f32.mrb[0].mxu0
    %v704 = vadd.f32 0.0, %v703
    %v705 = vpop.f32.mrb[0].mxu0
    %706 = vmatprep.mubr.bf16.mxu0 %v545
    %707 = vmatmul.mubr.bf16.gmra.mrb[0].mxu0 %v544
    %v708 = vpop.f32.mrb[0].mxu0
    %v709 = vadd.f32 0.0, %v708
    %v710 = vpop.f32.mrb[0].mxu0
    %v711 = vpop.f32.mrb[0].mxu0
    %v712 = vadd.f32 0.0, %v711
    %v713 = vpop.f32.mrb[0].mxu0
    %714 = vmatprep.mubr.bf16.mxu0 %v547
    %715 = vmatmul.mubr.bf16.gmra.mrb[0].mxu0 %v546
    %v716 = vpop.f32.mrb[0].mxu0
    %v717 = vadd.f32 0.0, %v716
    %v718 = vpop.f32.mrb[0].mxu0
    %v719 = vpop.f32.mrb[0].mxu0
    %v720 = vadd.f32 0.0, %v719
    %v721 = vpop.f32.mrb[0].mxu0
    %722 = vmatprep.mubr.bf16.mxu0 %v549
    %723 = vmatmul.mubr.bf16.gmra.mrb[0].mxu0 %v548
    %v724 = vpop.f32.mrb[0].mxu0
    %v725 = vadd.f32 0.0, %v724
    %v726 = vpop.f32.mrb[0].mxu0
    %v727 = vpop.f32.mrb[0].mxu0
    %v728 = vadd.f32 0.0, %v727
    %v729 = vpop.f32.mrb[0].mxu0
    %730 = vmatprep.mubr.bf16.mxu0 %v551
    %731 = vmatmul.mubr.bf16.gmra.mrb[0].mxu0 %v550
    %v732 = vpop.f32.mrb[0].mxu0
    %v733 = vadd.f32 0.0, %v732
    %v734 = vpop.f32.mrb[0].mxu0
    %v735 = vpop.f32.mrb[0].mxu0
    %v736 = vadd.f32 0.0, %v735
    %v737 = vpop.f32.mrb[0].mxu0
    %738 = vmatprep.mubr.bf16.mxu0 %v553
    %739 = vmatmul.mubr.bf16.gmra.mrb[0].mxu0 %v552
    %v740 = vpop.f32.mrb[0].mxu0
    %v741 = vadd.f32 0.0, %v740
    %v742 = vpop.f32.mrb[0].mxu0
    %v743 = vpop.f32.mrb[0].mxu0
    %v744 = vadd.f32 0.0, %v743
    %v745 = vpop.f32.mrb[0].mxu0
    %746 = vdwg.mxu0
    %v747 = vld [vmem:[%s6] sm:$0x1]
    %v749 = vlaneseq
    %v750 = vshrl.u32 %v749, 7
    %v751 = vsub.s32 0, %v750
    %v752 = vrot.slane %v747, %v751
    %v754 = vmul.f32 %v621, %v752
    %v755 = vmul.f32 %v624, %v752
    %v756 = vmul.f32 %v629, %v752
    %v757 = vmul.f32 %v632, %v752
    %v758 = vmul.f32 %v637, %v752
    %v759 = vmul.f32 %v640, %v752
    %v760 = vmul.f32 %v645, %v752
    %v761 = vmul.f32 %v648, %v752
    %v762 = vmul.f32 %v653, %v752
    %v763 = vmul.f32 %v656, %v752
    %v764 = vmul.f32 %v661, %v752
    %v765 = vmul.f32 %v664, %v752
    %v766 = vmul.f32 %v669, %v752
    %v767 = vmul.f32 %v672, %v752
    %v768 = vmul.f32 %v677, %v752
    %v769 = vmul.f32 %v680, %v752
    %v770 = vmul.f32 %v685, %v752
    %v771 = vmul.f32 %v688, %v752
    %v772 = vmul.f32 %v693, %v752
    %v773 = vmul.f32 %v696, %v752
    %v774 = vmul.f32 %v701, %v752
    %v775 = vmul.f32 %v704, %v752
    %v776 = vmul.f32 %v709, %v752
    %v777 = vmul.f32 %v712, %v752
    %v778 = vmul.f32 %v717, %v752
    %v779 = vmul.f32 %v720, %v752
    %v780 = vmul.f32 %v725, %v752
    %v781 = vmul.f32 %v728, %v752
    %v782 = vmul.f32 %v733, %v752
    %v783 = vmul.f32 %v736, %v752
    %v784 = vmul.f32 %v741, %v752
    %v785 = vmul.f32 %v744, %v752
    %v786 = vld [vmem:[%s7] sm:$0x1]
    %v788 = vlaneseq
    %v789 = vshrl.u32 %v788, 7
    %v790 = vsub.s32 0, %v789
    %v791 = vrot.slane %v786, %v790
    %v793 = vadd.f32 %v754, %v791
    %v794 = vadd.f32 %v755, %v791
    %v795 = vadd.f32 %v756, %v791
    %v796 = vadd.f32 %v757, %v791
    %v797 = vadd.f32 %v758, %v791
    %v798 = vadd.f32 %v759, %v791
    %v799 = vadd.f32 %v760, %v791
    %v800 = vadd.f32 %v761, %v791
    %v801 = vadd.f32 %v762, %v791
    %v802 = vadd.f32 %v763, %v791
    %v803 = vadd.f32 %v764, %v791
    %v804 = vadd.f32 %v765, %v791
    %v805 = vadd.f32 %v766, %v791
    %v806 = vadd.f32 %v767, %v791
    %v807 = vadd.f32 %v768, %v791
    %v808 = vadd.f32 %v769, %v791
    %v809 = vadd.f32 %v770, %v791
    %v810 = vadd.f32 %v771, %v791
    %v811 = vadd.f32 %v772, %v791
    %v812 = vadd.f32 %v773, %v791
    %v813 = vadd.f32 %v774, %v791
    %v814 = vadd.f32 %v775, %v791
    %v815 = vadd.f32 %v776, %v791
    %v816 = vadd.f32 %v777, %v791
    %v817 = vadd.f32 %v778, %v791
    %v818 = vadd.f32 %v779, %v791
    %v819 = vadd.f32 %v780, %v791
    %v820 = vadd.f32 %v781, %v791
    %v821 = vadd.f32 %v782, %v791
    %v822 = vadd.f32 %v783, %v791
    %v823 = vadd.f32 %v784, %v791
    %v824 = vadd.f32 %v785, %v791
    %v825 = vmax.f32 %v793, 0.0
    %v826 = vmax.f32 %v794, 0.0
    %v827 = vmax.f32 %v795, 0.0
    %v828 = vmax.f32 %v796, 0.0
    %v829 = vmax.f32 %v797, 0.0
    %v830 = vmax.f32 %v798, 0.0
    %v831 = vmax.f32 %v799, 0.0
    %v832 = vmax.f32 %v800, 0.0
    %v833 = vmax.f32 %v801, 0.0
    %v834 = vmax.f32 %v802, 0.0
    %v835 = vmax.f32 %v803, 0.0
    %v836 = vmax.f32 %v804, 0.0
    %v837 = vmax.f32 %v805, 0.0
    %v838 = vmax.f32 %v806, 0.0
    %v839 = vmax.f32 %v807, 0.0
    %v840 = vmax.f32 %v808, 0.0
    %v841 = vmax.f32 %v809, 0.0
    %v842 = vmax.f32 %v810, 0.0
    %v843 = vmax.f32 %v811, 0.0
    %v844 = vmax.f32 %v812, 0.0
    %v845 = vmax.f32 %v813, 0.0
    %v846 = vmax.f32 %v814, 0.0
    %v847 = vmax.f32 %v815, 0.0
    %v848 = vmax.f32 %v816, 0.0
    %v849 = vmax.f32 %v817, 0.0
    %v850 = vmax.f32 %v818, 0.0
    %v851 = vmax.f32 %v819, 0.0
    %v852 = vmax.f32 %v820, 0.0
    %v853 = vmax.f32 %v821, 0.0
    %v854 = vmax.f32 %v822, 0.0
    %v855 = vmax.f32 %v823, 0.0
    %v856 = vmax.f32 %v824, 0.0
    %v857 = vpack.c.bf16 %v826, %v825
    %v858 = vpack.c.bf16 %v828, %v827
    %v859 = vpack.c.bf16 %v830, %v829
    %v860 = vpack.c.bf16 %v832, %v831
    %v861 = vpack.c.bf16 %v834, %v833
    %v862 = vpack.c.bf16 %v836, %v835
    %v863 = vpack.c.bf16 %v838, %v837
    %v864 = vpack.c.bf16 %v840, %v839
    %v865 = vpack.c.bf16 %v842, %v841
    %v866 = vpack.c.bf16 %v844, %v843
    %v867 = vpack.c.bf16 %v846, %v845
    %v868 = vpack.c.bf16 %v848, %v847
    %v869 = vpack.c.bf16 %v850, %v849
    %v870 = vpack.c.bf16 %v852, %v851
    %v871 = vpack.c.bf16 %v854, %v853
    %v872 = vpack.c.bf16 %v856, %v855
    %v873 = vld [vmem:[%s5] sm:$0xf]
    %v874 = vld [vmem:[%s5 + $0x4] sm:$0xf]
    %v875 = vld [vmem:[%s5 + $0x8] sm:$0xf]
    %v876 = vld [vmem:[%s5 + $0xc] sm:$0xf]
    %v881 = vunpack.c.l.b16 %v873
    %v882 = vunpack.c.l.b16 %v874
    %v883 = vunpack.c.l.b16 %v875
    %v884 = vunpack.c.l.b16 %v876
    %v885 = vpack.c.b16 %v882, %v881
    %v886 = vpack.c.b16 %v884, %v883
    %vm889 = vcmask 261120
    %v891 = vsel %vm889, %v857, 0
    %v894 = vsel %vm889, %v858, 0
    %v897 = vsel %vm889, %v859, 0
    %v900 = vsel %vm889, %v860, 0
    %v903 = vsel %vm889, %v861, 0
    %v906 = vsel %vm889, %v862, 0
    %v909 = vsel %vm889, %v863, 0
    %v912 = vsel %vm889, %v864, 0
    %v915 = vsel %vm889, %v865, 0
    %v918 = vsel %vm889, %v866, 0
    %v921 = vsel %vm889, %v867, 0
    %v924 = vsel %vm889, %v868, 0
    %v927 = vsel %vm889, %v869, 0
    %v930 = vsel %vm889, %v870, 0
    %v933 = vsel %vm889, %v871, 0
    %v936 = vsel %vm889, %v872, 0
    %938 = vmatprep.subr.bf16.mxu0 0
    %939 = vmatpush1.bf16.msra.mxu0 %v885
    %940 = vmatprep.subr.bf16.mxu0 0
    %941 = vmatpush1.bf16.msra.mxu0 %v886
    %942 = vmatprep.subr.bf16.mxu0 0
    %943 = vmatpush1.bf16.msra.mxu0 0
    %944 = vmatprep.subr.bf16.mxu0 0
    %945 = vmatpush1.bf16.msra.mxu0 0
    %946 = vmatprep.subr.bf16.mxu0 0
    %947 = vmatpush1.bf16.msra.mxu0 0
    %948 = vmatprep.subr.bf16.mxu0 0
    %949 = vmatpush1.bf16.msra.mxu0 0
    %950 = vmatprep.subr.bf16.mxu0 0
    %951 = vmatpush1.bf16.msra.mxu0 0
    %952 = vmatprep.subr.bf16.mxu0 0
    %953 = vmatpush1.bf16.msra.mxu0 0
    %954 = vmatprep.subr.bf16.mxu0 0
    %955 = vmatpush1.bf16.msra.mxu0 0
    %956 = vmatprep.subr.bf16.mxu0 0
    %957 = vmatpush1.bf16.msra.mxu0 0
    %958 = vmatprep.subr.bf16.mxu0 0
    %959 = vmatpush1.bf16.msra.mxu0 0
    %960 = vmatprep.subr.bf16.mxu0 0
    %961 = vmatpush1.bf16.msra.mxu0 0
    %962 = vmatprep.subr.bf16.mxu0 0
    %963 = vmatpush1.bf16.msra.mxu0 0
    %964 = vmatprep.subr.bf16.mxu0 0
    %965 = vmatpush1.bf16.msra.mxu0 0
    %966 = vmatprep.subr.bf16.mxu0 0
    %967 = vmatpush1.bf16.msra.mxu0 0
    %968 = vmatprep.subr.bf16.mxu0 0
    %969 = vmatpush1.bf16.msra.mxu0 0
    %970 = vmatprep.mubr.bf16.mxu0 0
    %971 = vmatmul.mubr.bf16.gmra.mrb[0].mxu0 %v891
    %v972 = vpop.f32.mrb[0].mxu0
    %v973 = vadd.f32 0.0, %v972
    %v974 = vpop.f32.mrb[0].mxu0
    %v975 = vpop.f32.mrb[0].mxu0
    %v976 = vadd.f32 0.0, %v975
    %v977 = vpop.f32.mrb[0].mxu0
    %978 = vmatprep.mubr.bf16.mxu0 0
    %979 = vmatmul.mubr.bf16.gmra.mrb[0].mxu0 %v894
    %v980 = vpop.f32.mrb[0].mxu0
    %v981 = vadd.f32 0.0, %v980
    %v982 = vpop.f32.mrb[0].mxu0
    %v983 = vpop.f32.mrb[0].mxu0
    %v984 = vadd.f32 0.0, %v983
    %v985 = vpop.f32.mrb[0].mxu0
    %986 = vmatprep.mubr.bf16.mxu0 0
    %987 = vmatmul.mubr.bf16.gmra.mrb[0].mxu0 %v897
    %v988 = vpop.f32.mrb[0].mxu0
    %v989 = vadd.f32 0.0, %v988
    %v990 = vpop.f32.mrb[0].mxu0
    %v991 = vpop.f32.mrb[0].mxu0
    %v992 = vadd.f32 0.0, %v991
    %v993 = vpop.f32.mrb[0].mxu0
    %994 = vmatprep.mubr.bf16.mxu0 0
    %995 = vmatmul.mubr.bf16.gmra.mrb[0].mxu0 %v900
    %v996 = vpop.f32.mrb[0].mxu0
    %v997 = vadd.f32 0.0, %v996
    %v998 = vpop.f32.mrb[0].mxu0
    %v999 = vpop.f32.mrb[0].mxu0
    %v1000 = vadd.f32 0.0, %v999
    %v1001 = vpop.f32.mrb[0].mxu0
    %1002 = vmatprep.mubr.bf16.mxu0 0
    %1003 = vmatmul.mubr.bf16.gmra.mrb[0].mxu0 %v903
    %v1004 = vpop.f32.mrb[0].mxu0
    %v1005 = vadd.f32 0.0, %v1004
    %v1006 = vpop.f32.mrb[0].mxu0
    %v1007 = vpop.f32.mrb[0].mxu0
    %v1008 = vadd.f32 0.0, %v1007
    %v1009 = vpop.f32.mrb[0].mxu0
    %1010 = vmatprep.mubr.bf16.mxu0 0
    %1011 = vmatmul.mubr.bf16.gmra.mrb[0].mxu0 %v906
    %v1012 = vpop.f32.mrb[0].mxu0
    %v1013 = vadd.f32 0.0, %v1012
    %v1014 = vpop.f32.mrb[0].mxu0
    %v1015 = vpop.f32.mrb[0].mxu0
    %v1016 = vadd.f32 0.0, %v1015
    %v1017 = vpop.f32.mrb[0].mxu0
    %1018 = vmatprep.mubr.bf16.mxu0 0
    %1019 = vmatmul.mubr.bf16.gmra.mrb[0].mxu0 %v909
    %v1020 = vpop.f32.mrb[0].mxu0
    %v1021 = vadd.f32 0.0, %v1020
    %v1022 = vpop.f32.mrb[0].mxu0
    %v1023 = vpop.f32.mrb[0].mxu0
    %v1024 = vadd.f32 0.0, %v1023
    %v1025 = vpop.f32.mrb[0].mxu0
    %1026 = vmatprep.mubr.bf16.mxu0 0
    %1027 = vmatmul.mubr.bf16.gmra.mrb[0].mxu0 %v912
    %v1028 = vpop.f32.mrb[0].mxu0
    %v1029 = vadd.f32 0.0, %v1028
    %v1030 = vpop.f32.mrb[0].mxu0
    %v1031 = vpop.f32.mrb[0].mxu0
    %v1032 = vadd.f32 0.0, %v1031
    %v1033 = vpop.f32.mrb[0].mxu0
    %1034 = vmatprep.mubr.bf16.mxu0 0
    %1035 = vmatmul.mubr.bf16.gmra.mrb[0].mxu0 %v915
    %v1036 = vpop.f32.mrb[0].mxu0
    %v1037 = vadd.f32 0.0, %v1036
    %v1038 = vpop.f32.mrb[0].mxu0
    %v1039 = vpop.f32.mrb[0].mxu0
    %v1040 = vadd.f32 0.0, %v1039
    %v1041 = vpop.f32.mrb[0].mxu0
    %1042 = vmatprep.mubr.bf16.mxu0 0
    %1043 = vmatmul.mubr.bf16.gmra.mrb[0].mxu0 %v918
    %v1044 = vpop.f32.mrb[0].mxu0
    %v1045 = vadd.f32 0.0, %v1044
    %v1046 = vpop.f32.mrb[0].mxu0
    %v1047 = vpop.f32.mrb[0].mxu0
    %v1048 = vadd.f32 0.0, %v1047
    %v1049 = vpop.f32.mrb[0].mxu0
    %1050 = vmatprep.mubr.bf16.mxu0 0
    %1051 = vmatmul.mubr.bf16.gmra.mrb[0].mxu0 %v921
    %v1052 = vpop.f32.mrb[0].mxu0
    %v1053 = vadd.f32 0.0, %v1052
    %v1054 = vpop.f32.mrb[0].mxu0
    %v1055 = vpop.f32.mrb[0].mxu0
    %v1056 = vadd.f32 0.0, %v1055
    %v1057 = vpop.f32.mrb[0].mxu0
    %1058 = vmatprep.mubr.bf16.mxu0 0
    %1059 = vmatmul.mubr.bf16.gmra.mrb[0].mxu0 %v924
    %v1060 = vpop.f32.mrb[0].mxu0
    %v1061 = vadd.f32 0.0, %v1060
    %v1062 = vpop.f32.mrb[0].mxu0
    %v1063 = vpop.f32.mrb[0].mxu0
    %v1064 = vadd.f32 0.0, %v1063
    %v1065 = vpop.f32.mrb[0].mxu0
    %1066 = vmatprep.mubr.bf16.mxu0 0
    %1067 = vmatmul.mubr.bf16.gmra.mrb[0].mxu0 %v927
    %v1068 = vpop.f32.mrb[0].mxu0
    %v1069 = vadd.f32 0.0, %v1068
    %v1070 = vpop.f32.mrb[0].mxu0
    %v1071 = vpop.f32.mrb[0].mxu0
    %v1072 = vadd.f32 0.0, %v1071
    %v1073 = vpop.f32.mrb[0].mxu0
    %1074 = vmatprep.mubr.bf16.mxu0 0
    %1075 = vmatmul.mubr.bf16.gmra.mrb[0].mxu0 %v930
    %v1076 = vpop.f32.mrb[0].mxu0
    %v1077 = vadd.f32 0.0, %v1076
    %v1078 = vpop.f32.mrb[0].mxu0
    %v1079 = vpop.f32.mrb[0].mxu0
    %v1080 = vadd.f32 0.0, %v1079
    %v1081 = vpop.f32.mrb[0].mxu0
    %1082 = vmatprep.mubr.bf16.mxu0 0
    %1083 = vmatmul.mubr.bf16.gmra.mrb[0].mxu0 %v933
    %v1084 = vpop.f32.mrb[0].mxu0
    %v1085 = vadd.f32 0.0, %v1084
    %v1086 = vpop.f32.mrb[0].mxu0
    %v1087 = vpop.f32.mrb[0].mxu0
    %v1088 = vadd.f32 0.0, %v1087
    %v1089 = vpop.f32.mrb[0].mxu0
    %1090 = vmatprep.mubr.bf16.mxu0 0
    %1091 = vmatmul.mubr.bf16.gmra.mrb[0].mxu0 %v936
    %v1092 = vpop.f32.mrb[0].mxu0
    %v1093 = vadd.f32 0.0, %v1092
    %v1094 = vpop.f32.mrb[0].mxu0
    %v1095 = vpop.f32.mrb[0].mxu0
    %v1096 = vadd.f32 0.0, %v1095
    %v1097 = vpop.f32.mrb[0].mxu0
    %1098 = vdwg.mxu0
    %v1099 = vpack.c.bf16 %v976, %v973
    %v1100 = vpack.c.bf16 %v984, %v981
    %v1101 = vpack.c.bf16 %v992, %v989
    %v1102 = vpack.c.bf16 %v1000, %v997
    %v1103 = vpack.c.bf16 %v1008, %v1005
    %v1104 = vpack.c.bf16 %v1016, %v1013
    %v1105 = vpack.c.bf16 %v1024, %v1021
    %v1106 = vpack.c.bf16 %v1032, %v1029
    %v1107 = vpack.c.bf16 %v1040, %v1037
    %v1108 = vpack.c.bf16 %v1048, %v1045
    %v1109 = vpack.c.bf16 %v1056, %v1053
    %v1110 = vpack.c.bf16 %v1064, %v1061
    %v1111 = vpack.c.bf16 %v1072, %v1069
    %v1112 = vpack.c.bf16 %v1080, %v1077
    %v1113 = vpack.c.bf16 %v1088, %v1085
    %v1114 = vpack.c.bf16 %v1096, %v1093
    %1115 = vmatprep.subr.bf16.mxu0 0
    %1116 = vmatpush1.bf16.msra.mxu0 %v1099
    %1117 = vmatprep.subr.bf16.mxu0 0
    %1118 = vmatpush1.bf16.msra.mxu0 %v1100
    %1119 = vmatprep.subr.bf16.mxu0 0
    %1120 = vmatpush1.bf16.msra.mxu0 %v1101
    %1121 = vmatprep.subr.bf16.mxu0 0
    %1122 = vmatpush1.bf16.msra.mxu0 %v1102
    %1123 = vmatprep.subr.bf16.mxu0 0
    %1124 = vmatpush1.bf16.msra.mxu0 %v1103
    %1125 = vmatprep.subr.bf16.mxu0 0
    %1126 = vmatpush1.bf16.msra.mxu0 %v1104
    %1127 = vmatprep.subr.bf16.mxu0 0
    %1128 = vmatpush1.bf16.msra.mxu0 %v1105
    %1129 = vmatprep.subr.bf16.mxu0 0
    %1130 = vmatpush1.bf16.msra.mxu0 %v1106
    %1131 = vmatprep.subr.bf16.mxu0 0
    %1132 = vmatpush1.bf16.msra.mxu0 %v1107
    %1133 = vmatprep.subr.bf16.mxu0 0
    %1134 = vmatpush1.bf16.msra.mxu0 %v1108
    %1135 = vmatprep.subr.bf16.mxu0 0
    %1136 = vmatpush1.bf16.msra.mxu0 %v1109
    %1137 = vmatprep.subr.bf16.mxu0 0
    %1138 = vmatpush1.bf16.msra.mxu0 %v1110
    %1139 = vmatprep.subr.bf16.mxu0 0
    %1140 = vmatpush1.bf16.msra.mxu0 %v1111
    %1141 = vmatprep.subr.bf16.mxu0 0
    %1142 = vmatpush1.bf16.msra.mxu0 %v1112
    %1143 = vmatprep.subr.bf16.mxu0 0
    %1144 = vmatpush1.bf16.msra.mxu0 %v1113
    %1145 = vmatprep.subr.bf16.mxu0 0
    %1146 = vmatpush1.bf16.msra.mxu0 %v1114
    %1147 = vmatprep.mubr.bf16.mxu0 %v523
    %1148 = vmatmul.mubr.bf16.gmra.mrb[0].mxu0 %v522
    %v1149 = vpop.f32.mrb[0].mxu0
    %v1150 = vadd.f32 0.0, %v1149
    %v1151 = vpop.f32.mrb[0].mxu0
    %v1152 = vpop.f32.mrb[0].mxu0
    %v1153 = vadd.f32 0.0, %v1152
    %v1154 = vpop.f32.mrb[0].mxu0
    %1155 = vmatprep.mubr.bf16.mxu0 %v525
    %1156 = vmatmul.mubr.bf16.gmra.mrb[0].mxu0 %v524
    %v1157 = vpop.f32.mrb[0].mxu0
    %v1158 = vadd.f32 0.0, %v1157
    %v1159 = vpop.f32.mrb[0].mxu0
    %v1160 = vpop.f32.mrb[0].mxu0
    %v1161 = vadd.f32 0.0, %v1160
    %v1162 = vpop.f32.mrb[0].mxu0
    %1163 = vmatprep.mubr.bf16.mxu0 %v527
    %1164 = vmatmul.mubr.bf16.gmra.mrb[0].mxu0 %v526
    %v1165 = vpop.f32.mrb[0].mxu0
    %v1166 = vadd.f32 0.0, %v1165
    %v1167 = vpop.f32.mrb[0].mxu0
    %v1168 = vpop.f32.mrb[0].mxu0
    %v1169 = vadd.f32 0.0, %v1168
    %v1170 = vpop.f32.mrb[0].mxu0
    %1171 = vmatprep.mubr.bf16.mxu0 %v529
    %1172 = vmatmul.mubr.bf16.gmra.mrb[0].mxu0 %v528
    %v1173 = vpop.f32.mrb[0].mxu0
    %v1174 = vadd.f32 0.0, %v1173
    %v1175 = vpop.f32.mrb[0].mxu0
    %v1176 = vpop.f32.mrb[0].mxu0
    %v1177 = vadd.f32 0.0, %v1176
    %v1178 = vpop.f32.mrb[0].mxu0
    %1179 = vmatprep.mubr.bf16.mxu0 %v531
    %1180 = vmatmul.mubr.bf16.gmra.mrb[0].mxu0 %v530
    %v1181 = vpop.f32.mrb[0].mxu0
    %v1182 = vadd.f32 0.0, %v1181
    %v1183 = vpop.f32.mrb[0].mxu0
    %v1184 = vpop.f32.mrb[0].mxu0
    %v1185 = vadd.f32 0.0, %v1184
    %v1186 = vpop.f32.mrb[0].mxu0
    %1187 = vmatprep.mubr.bf16.mxu0 %v533
    %1188 = vmatmul.mubr.bf16.gmra.mrb[0].mxu0 %v532
    %v1189 = vpop.f32.mrb[0].mxu0
    %v1190 = vadd.f32 0.0, %v1189
    %v1191 = vpop.f32.mrb[0].mxu0
    %v1192 = vpop.f32.mrb[0].mxu0
    %v1193 = vadd.f32 0.0, %v1192
    %v1194 = vpop.f32.mrb[0].mxu0
    %1195 = vmatprep.mubr.bf16.mxu0 %v535
    %1196 = vmatmul.mubr.bf16.gmra.mrb[0].mxu0 %v534
    %v1197 = vpop.f32.mrb[0].mxu0
    %v1198 = vadd.f32 0.0, %v1197
    %v1199 = vpop.f32.mrb[0].mxu0
    %v1200 = vpop.f32.mrb[0].mxu0
    %v1201 = vadd.f32 0.0, %v1200
    %v1202 = vpop.f32.mrb[0].mxu0
    %1203 = vmatprep.mubr.bf16.mxu0 %v537
    %1204 = vmatmul.mubr.bf16.gmra.mrb[0].mxu0 %v536
    %v1205 = vpop.f32.mrb[0].mxu0
    %v1206 = vadd.f32 0.0, %v1205
    %v1207 = vpop.f32.mrb[0].mxu0
    %v1208 = vpop.f32.mrb[0].mxu0
    %v1209 = vadd.f32 0.0, %v1208
    %v1210 = vpop.f32.mrb[0].mxu0
    %1211 = vmatprep.mubr.bf16.mxu0 %v539
    %1212 = vmatmul.mubr.bf16.gmra.mrb[0].mxu0 %v538
    %v1213 = vpop.f32.mrb[0].mxu0
    %v1214 = vadd.f32 0.0, %v1213
    %v1215 = vpop.f32.mrb[0].mxu0
    %v1216 = vpop.f32.mrb[0].mxu0
    %v1217 = vadd.f32 0.0, %v1216
    %v1218 = vpop.f32.mrb[0].mxu0
    %1219 = vmatprep.mubr.bf16.mxu0 %v541
    %1220 = vmatmul.mubr.bf16.gmra.mrb[0].mxu0 %v540
    %v1221 = vpop.f32.mrb[0].mxu0
    %v1222 = vadd.f32 0.0, %v1221
    %v1223 = vpop.f32.mrb[0].mxu0
    %v1224 = vpop.f32.mrb[0].mxu0
    %v1225 = vadd.f32 0.0, %v1224
    %v1226 = vpop.f32.mrb[0].mxu0
    %1227 = vmatprep.mubr.bf16.mxu0 %v543
    %1228 = vmatmul.mubr.bf16.gmra.mrb[0].mxu0 %v542
    %v1229 = vpop.f32.mrb[0].mxu0
    %v1230 = vadd.f32 0.0, %v1229
    %v1231 = vpop.f32.mrb[0].mxu0
    %v1232 = vpop.f32.mrb[0].mxu0
    %v1233 = vadd.f32 0.0, %v1232
    %v1234 = vpop.f32.mrb[0].mxu0
    %1235 = vmatprep.mubr.bf16.mxu0 %v545
    %1236 = vmatmul.mubr.bf16.gmra.mrb[0].mxu0 %v544
    %v1237 = vpop.f32.mrb[0].mxu0
    %v1238 = vadd.f32 0.0, %v1237
    %v1239 = vpop.f32.mrb[0].mxu0
    %v1240 = vpop.f32.mrb[0].mxu0
    %v1241 = vadd.f32 0.0, %v1240
    %v1242 = vpop.f32.mrb[0].mxu0
    %1243 = vmatprep.mubr.bf16.mxu0 %v547
    %1244 = vmatmul.mubr.bf16.gmra.mrb[0].mxu0 %v546
    %v1245 = vpop.f32.mrb[0].mxu0
    %v1246 = vadd.f32 0.0, %v1245
    %v1247 = vpop.f32.mrb[0].mxu0
    %v1248 = vpop.f32.mrb[0].mxu0
    %v1249 = vadd.f32 0.0, %v1248
    %v1250 = vpop.f32.mrb[0].mxu0
    %1251 = vmatprep.mubr.bf16.mxu0 %v549
    %1252 = vmatmul.mubr.bf16.gmra.mrb[0].mxu0 %v548
    %v1253 = vpop.f32.mrb[0].mxu0
    %v1254 = vadd.f32 0.0, %v1253
    %v1255 = vpop.f32.mrb[0].mxu0
    %v1256 = vpop.f32.mrb[0].mxu0
    %v1257 = vadd.f32 0.0, %v1256
    %v1258 = vpop.f32.mrb[0].mxu0
    %1259 = vmatprep.mubr.bf16.mxu0 %v551
    %1260 = vmatmul.mubr.bf16.gmra.mrb[0].mxu0 %v550
    %v1261 = vpop.f32.mrb[0].mxu0
    %v1262 = vadd.f32 0.0, %v1261
    %v1263 = vpop.f32.mrb[0].mxu0
    %v1264 = vpop.f32.mrb[0].mxu0
    %v1265 = vadd.f32 0.0, %v1264
    %v1266 = vpop.f32.mrb[0].mxu0
    %1267 = vmatprep.mubr.bf16.mxu0 %v553
    %1268 = vmatmul.mubr.bf16.gmra.mrb[0].mxu0 %v552
    %v1269 = vpop.f32.mrb[0].mxu0
    %v1270 = vadd.f32 0.0, %v1269
    %v1271 = vpop.f32.mrb[0].mxu0
    %v1272 = vpop.f32.mrb[0].mxu0
    %v1273 = vadd.f32 0.0, %v1272
    %v1274 = vpop.f32.mrb[0].mxu0
    %1275 = vdwg.mxu0
    %v1276 = vld [vmem:[%s8] sm:$0x1]
    %v1278 = vlaneseq
    %v1279 = vshrl.u32 %v1278, 7
    %v1280 = vsub.s32 0, %v1279
    %v1281 = vrot.slane %v1276, %v1280
    %v1283 = vmul.f32 %v1150, %v1281
    %v1284 = vmul.f32 %v1153, %v1281
    %v1285 = vmul.f32 %v1158, %v1281
    %v1286 = vmul.f32 %v1161, %v1281
    %v1287 = vmul.f32 %v1166, %v1281
    %v1288 = vmul.f32 %v1169, %v1281
    %v1289 = vmul.f32 %v1174, %v1281
    %v1290 = vmul.f32 %v1177, %v1281
    %v1291 = vmul.f32 %v1182, %v1281
    %v1292 = vmul.f32 %v1185, %v1281
    %v1293 = vmul.f32 %v1190, %v1281
    %v1294 = vmul.f32 %v1193, %v1281
    %v1295 = vmul.f32 %v1198, %v1281
    %v1296 = vmul.f32 %v1201, %v1281
    %v1297 = vmul.f32 %v1206, %v1281
    %v1298 = vmul.f32 %v1209, %v1281
    %v1299 = vmul.f32 %v1214, %v1281
    %v1300 = vmul.f32 %v1217, %v1281
    %v1301 = vmul.f32 %v1222, %v1281
    %v1302 = vmul.f32 %v1225, %v1281
    %v1303 = vmul.f32 %v1230, %v1281
    %v1304 = vmul.f32 %v1233, %v1281
    %v1305 = vmul.f32 %v1238, %v1281
    %v1306 = vmul.f32 %v1241, %v1281
    %v1307 = vmul.f32 %v1246, %v1281
    %v1308 = vmul.f32 %v1249, %v1281
    %v1309 = vmul.f32 %v1254, %v1281
    %v1310 = vmul.f32 %v1257, %v1281
    %v1311 = vmul.f32 %v1262, %v1281
    %v1312 = vmul.f32 %v1265, %v1281
    %v1313 = vmul.f32 %v1270, %v1281
    %v1314 = vmul.f32 %v1273, %v1281
    %v1315 = vld [vmem:[%s9] sm:$0x1]
    %v1317 = vlaneseq
    %v1318 = vshrl.u32 %v1317, 7
    %v1319 = vsub.s32 0, %v1318
    %v1320 = vrot.slane %v1315, %v1319
    %v1322 = vadd.f32 %v1283, %v1320
    %v1323 = vadd.f32 %v1284, %v1320
    %v1324 = vadd.f32 %v1285, %v1320
    %v1325 = vadd.f32 %v1286, %v1320
    %v1326 = vadd.f32 %v1287, %v1320
    %v1327 = vadd.f32 %v1288, %v1320
    %v1328 = vadd.f32 %v1289, %v1320
    %v1329 = vadd.f32 %v1290, %v1320
    %v1330 = vadd.f32 %v1291, %v1320
    %v1331 = vadd.f32 %v1292, %v1320
    %v1332 = vadd.f32 %v1293, %v1320
    %v1333 = vadd.f32 %v1294, %v1320
    %v1334 = vadd.f32 %v1295, %v1320
    %v1335 = vadd.f32 %v1296, %v1320
    %v1336 = vadd.f32 %v1297, %v1320
    %v1337 = vadd.f32 %v1298, %v1320
    %v1338 = vadd.f32 %v1299, %v1320
    %v1339 = vadd.f32 %v1300, %v1320
    %v1340 = vadd.f32 %v1301, %v1320
    %v1341 = vadd.f32 %v1302, %v1320
    %v1342 = vadd.f32 %v1303, %v1320
    %v1343 = vadd.f32 %v1304, %v1320
    %v1344 = vadd.f32 %v1305, %v1320
    %v1345 = vadd.f32 %v1306, %v1320
    %v1346 = vadd.f32 %v1307, %v1320
    %v1347 = vadd.f32 %v1308, %v1320
    %v1348 = vadd.f32 %v1309, %v1320
    %v1349 = vadd.f32 %v1310, %v1320
    %v1350 = vadd.f32 %v1311, %v1320
    %v1351 = vadd.f32 %v1312, %v1320
    %v1352 = vadd.f32 %v1313, %v1320
    %v1353 = vadd.f32 %v1314, %v1320
    %v1354 = vmax.f32 %v1322, 0.0
    %v1355 = vmax.f32 %v1323, 0.0
    %v1356 = vmax.f32 %v1324, 0.0
    %v1357 = vmax.f32 %v1325, 0.0
    %v1358 = vmax.f32 %v1326, 0.0
    %v1359 = vmax.f32 %v1327, 0.0
    %v1360 = vmax.f32 %v1328, 0.0
    %v1361 = vmax.f32 %v1329, 0.0
    %v1362 = vmax.f32 %v1330, 0.0
    %v1363 = vmax.f32 %v1331, 0.0
    %v1364 = vmax.f32 %v1332, 0.0
    %v1365 = vmax.f32 %v1333, 0.0
    %v1366 = vmax.f32 %v1334, 0.0
    %v1367 = vmax.f32 %v1335, 0.0
    %v1368 = vmax.f32 %v1336, 0.0
    %v1369 = vmax.f32 %v1337, 0.0
    %v1370 = vmax.f32 %v1338, 0.0
    %v1371 = vmax.f32 %v1339, 0.0
    %v1372 = vmax.f32 %v1340, 0.0
    %v1373 = vmax.f32 %v1341, 0.0
    %v1374 = vmax.f32 %v1342, 0.0
    %v1375 = vmax.f32 %v1343, 0.0
    %v1376 = vmax.f32 %v1344, 0.0
    %v1377 = vmax.f32 %v1345, 0.0
    %v1378 = vmax.f32 %v1346, 0.0
    %v1379 = vmax.f32 %v1347, 0.0
    %v1380 = vmax.f32 %v1348, 0.0
    %v1381 = vmax.f32 %v1349, 0.0
    %v1382 = vmax.f32 %v1350, 0.0
    %v1383 = vmax.f32 %v1351, 0.0
    %v1384 = vmax.f32 %v1352, 0.0
    %v1385 = vmax.f32 %v1353, 0.0
    %v1386 = vld [vmem:[%s10] sm:$0x1]
    %v1388 = vlaneseq
    %v1389 = vshrl.u32 %v1388, 7
    %v1390 = vsub.s32 0, %v1389
    %v1391 = vrot.slane %v1386, %v1390
    %v1393 = vmul.f32 %v1354, %v1391
    %v1394 = vmul.f32 %v1355, %v1391
    %v1395 = vmul.f32 %v1356, %v1391
    %v1396 = vmul.f32 %v1357, %v1391
    %v1397 = vmul.f32 %v1358, %v1391
    %v1398 = vmul.f32 %v1359, %v1391
    %v1399 = vmul.f32 %v1360, %v1391
    %v1400 = vmul.f32 %v1361, %v1391
    %v1401 = vmul.f32 %v1362, %v1391
    %v1402 = vmul.f32 %v1363, %v1391
    %v1403 = vmul.f32 %v1364, %v1391
    %v1404 = vmul.f32 %v1365, %v1391
    %v1405 = vmul.f32 %v1366, %v1391
    %v1406 = vmul.f32 %v1367, %v1391
    %v1407 = vmul.f32 %v1368, %v1391
    %v1408 = vmul.f32 %v1369, %v1391
    %v1409 = vmul.f32 %v1370, %v1391
    %v1410 = vmul.f32 %v1371, %v1391
    %v1411 = vmul.f32 %v1372, %v1391
    %v1412 = vmul.f32 %v1373, %v1391
    %v1413 = vmul.f32 %v1374, %v1391
    %v1414 = vmul.f32 %v1375, %v1391
    %v1415 = vmul.f32 %v1376, %v1391
    %v1416 = vmul.f32 %v1377, %v1391
    %v1417 = vmul.f32 %v1378, %v1391
    %v1418 = vmul.f32 %v1379, %v1391
    %v1419 = vmul.f32 %v1380, %v1391
    %v1420 = vmul.f32 %v1381, %v1391
    %v1421 = vmul.f32 %v1382, %v1391
    %v1422 = vmul.f32 %v1383, %v1391
    %v1423 = vmul.f32 %v1384, %v1391
    %v1424 = vmul.f32 %v1385, %v1391
    %v1425 = vsel %vm889, %v1393, 0.0
    %1426 = vadd.xlane.f32.xlu0 %v1425
    %v1427 = vpop.xlane.xlu0 %1426
    %v1428 = vsel %vm889, %v1394, 0.0
    %1429 = vadd.xlane.f32.xlu0 %v1428
    %v1430 = vpop.xlane.xlu0 %1429
    %v1431 = vsel %vm889, %v1395, 0.0
    %1432 = vadd.xlane.f32.xlu0 %v1431
    %v1433 = vpop.xlane.xlu0 %1432
    %v1434 = vsel %vm889, %v1396, 0.0
    %1435 = vadd.xlane.f32.xlu0 %v1434
    %v1436 = vpop.xlane.xlu0 %1435
    %v1437 = vsel %vm889, %v1397, 0.0
    %1438 = vadd.xlane.f32.xlu0 %v1437
    %v1439 = vpop.xlane.xlu0 %1438
    %v1440 = vsel %vm889, %v1398, 0.0
    %1441 = vadd.xlane.f32.xlu0 %v1440
    %v1442 = vpop.xlane.xlu0 %1441
    %v1443 = vsel %vm889, %v1399, 0.0
    %1444 = vadd.xlane.f32.xlu0 %v1443
    %v1445 = vpop.xlane.xlu0 %1444
    %v1446 = vsel %vm889, %v1400, 0.0
    %1447 = vadd.xlane.f32.xlu0 %v1446
    %v1448 = vpop.xlane.xlu0 %1447
    %v1449 = vsel %vm889, %v1401, 0.0
    %1450 = vadd.xlane.f32.xlu0 %v1449
    %v1451 = vpop.xlane.xlu0 %1450
    %v1452 = vsel %vm889, %v1402, 0.0
    %1453 = vadd.xlane.f32.xlu0 %v1452
    %v1454 = vpop.xlane.xlu0 %1453
    %v1455 = vsel %vm889, %v1403, 0.0
    %1456 = vadd.xlane.f32.xlu0 %v1455
    %v1457 = vpop.xlane.xlu0 %1456
    %v1458 = vsel %vm889, %v1404, 0.0
    %1459 = vadd.xlane.f32.xlu0 %v1458
    %v1460 = vpop.xlane.xlu0 %1459
    %v1461 = vsel %vm889, %v1405, 0.0
    %1462 = vadd.xlane.f32.xlu0 %v1461
    %v1463 = vpop.xlane.xlu0 %1462
    %v1464 = vsel %vm889, %v1406, 0.0
    %1465 = vadd.xlane.f32.xlu0 %v1464
    %v1466 = vpop.xlane.xlu0 %1465
    %v1467 = vsel %vm889, %v1407, 0.0
    %1468 = vadd.xlane.f32.xlu0 %v1467
    %v1469 = vpop.xlane.xlu0 %1468
    %v1470 = vsel %vm889, %v1408, 0.0
    %1471 = vadd.xlane.f32.xlu0 %v1470
    %v1472 = vpop.xlane.xlu0 %1471
    %v1473 = vsel %vm889, %v1409, 0.0
    %1474 = vadd.xlane.f32.xlu0 %v1473
    %v1475 = vpop.xlane.xlu0 %1474
    %v1476 = vsel %vm889, %v1410, 0.0
    %1477 = vadd.xlane.f32.xlu0 %v1476
    %v1478 = vpop.xlane.xlu0 %1477
    %v1479 = vsel %vm889, %v1411, 0.0
    %1480 = vadd.xlane.f32.xlu0 %v1479
    %v1481 = vpop.xlane.xlu0 %1480
    %v1482 = vsel %vm889, %v1412, 0.0
    %1483 = vadd.xlane.f32.xlu0 %v1482
    %v1484 = vpop.xlane.xlu0 %1483
    %v1485 = vsel %vm889, %v1413, 0.0
    %1486 = vadd.xlane.f32.xlu0 %v1485
    %v1487 = vpop.xlane.xlu0 %1486
    %v1488 = vsel %vm889, %v1414, 0.0
    %1489 = vadd.xlane.f32.xlu0 %v1488
    %v1490 = vpop.xlane.xlu0 %1489
    %v1491 = vsel %vm889, %v1415, 0.0
    %1492 = vadd.xlane.f32.xlu0 %v1491
    %v1493 = vpop.xlane.xlu0 %1492
    %v1494 = vsel %vm889, %v1416, 0.0
    %1495 = vadd.xlane.f32.xlu0 %v1494
    %v1496 = vpop.xlane.xlu0 %1495
    %v1497 = vsel %vm889, %v1417, 0.0
    %1498 = vadd.xlane.f32.xlu0 %v1497
    %v1499 = vpop.xlane.xlu0 %1498
    %v1500 = vsel %vm889, %v1418, 0.0
    %1501 = vadd.xlane.f32.xlu0 %v1500
    %v1502 = vpop.xlane.xlu0 %1501
    %v1503 = vsel %vm889, %v1419, 0.0
    %1504 = vadd.xlane.f32.xlu0 %v1503
    %v1505 = vpop.xlane.xlu0 %1504
    %v1506 = vsel %vm889, %v1420, 0.0
    %1507 = vadd.xlane.f32.xlu0 %v1506
    %v1508 = vpop.xlane.xlu0 %1507
    %v1509 = vsel %vm889, %v1421, 0.0
    %1510 = vadd.xlane.f32.xlu0 %v1509
    %v1511 = vpop.xlane.xlu0 %1510
    %v1512 = vsel %vm889, %v1422, 0.0
    %1513 = vadd.xlane.f32.xlu0 %v1512
    %v1514 = vpop.xlane.xlu0 %1513
    %v1515 = vsel %vm889, %v1423, 0.0
    %1516 = vadd.xlane.f32.xlu0 %v1515
    %v1517 = vpop.xlane.xlu0 %1516
    %v1518 = vsel %vm889, %v1424, 0.0
    %1519 = vadd.xlane.f32.xlu0 %v1518
    %v1520 = vpop.xlane.xlu0 %1519
    %v1521 = vld [vmem:[%s2] sm:$0xf]
    %v1522 = vld [vmem:[%s2 + $0x4] sm:$0xf]
    %v1523 = vld [vmem:[%s2 + $0x8] sm:$0xf]
    %v1524 = vld [vmem:[%s2 + $0xc] sm:$0xf]
    %v1525 = vld [vmem:[%s2 + $0x10] sm:$0xf]
    %v1526 = vld [vmem:[%s2 + $0x14] sm:$0xf]
    %v1527 = vld [vmem:[%s2 + $0x18] sm:$0xf]
    %v1528 = vld [vmem:[%s2 + $0x1c] sm:$0xf]
    %v1529 = vld [vmem:[%s2 + $0x20] sm:$0xf]
    %v1530 = vld [vmem:[%s2 + $0x24] sm:$0xf]
    %v1531 = vld [vmem:[%s2 + $0x28] sm:$0xf]
    %v1532 = vld [vmem:[%s2 + $0x2c] sm:$0xf]
    %v1533 = vld [vmem:[%s2 + $0x30] sm:$0xf]
    %v1534 = vld [vmem:[%s2 + $0x34] sm:$0xf]
    %v1535 = vld [vmem:[%s2 + $0x38] sm:$0xf]
    %v1536 = vld [vmem:[%s2 + $0x3c] sm:$0xf]
    %v1537 = vld [vmem:[%s2 + $0x40] sm:$0xf]
    %v1538 = vld [vmem:[%s2 + $0x44] sm:$0xf]
    %v1539 = vld [vmem:[%s2 + $0x48] sm:$0xf]
    %v1540 = vld [vmem:[%s2 + $0x4c] sm:$0xf]
    %v1541 = vld [vmem:[%s2 + $0x50] sm:$0xf]
    %v1542 = vld [vmem:[%s2 + $0x54] sm:$0xf]
    %v1543 = vld [vmem:[%s2 + $0x58] sm:$0xf]
    %v1544 = vld [vmem:[%s2 + $0x5c] sm:$0xf]
    %v1545 = vld [vmem:[%s2 + $0x60] sm:$0xf]
    %v1546 = vld [vmem:[%s2 + $0x64] sm:$0xf]
    %v1547 = vld [vmem:[%s2 + $0x68] sm:$0xf]
    %v1548 = vld [vmem:[%s2 + $0x6c] sm:$0xf]
    %v1549 = vld [vmem:[%s2 + $0x70] sm:$0xf]
    %v1550 = vld [vmem:[%s2 + $0x74] sm:$0xf]
    %v1551 = vld [vmem:[%s2 + $0x78] sm:$0xf]
    %v1552 = vld [vmem:[%s2 + $0x7c] sm:$0xf]
    %v1553 = vunpack.c.l.bf16 %v1521
    %v1554 = vunpack.c.l.bf16 %v1522
    %v1555 = vunpack.c.l.bf16 %v1523
    %v1556 = vunpack.c.l.bf16 %v1524
    %v1557 = vunpack.c.l.bf16 %v1525
    %v1558 = vunpack.c.l.bf16 %v1526
    %v1559 = vunpack.c.l.bf16 %v1527
    %v1560 = vunpack.c.l.bf16 %v1528
    %v1561 = vunpack.c.l.bf16 %v1529
    %v1562 = vunpack.c.l.bf16 %v1530
    %v1563 = vunpack.c.l.bf16 %v1531
    %v1564 = vunpack.c.l.bf16 %v1532
    %v1565 = vunpack.c.l.bf16 %v1533
    %v1566 = vunpack.c.l.bf16 %v1534
    %v1567 = vunpack.c.l.bf16 %v1535
    %v1568 = vunpack.c.l.bf16 %v1536
    %v1569 = vunpack.c.l.bf16 %v1537
    %v1570 = vunpack.c.l.bf16 %v1538
    %v1571 = vunpack.c.l.bf16 %v1539
    %v1572 = vunpack.c.l.bf16 %v1540
    %v1573 = vunpack.c.l.bf16 %v1541
    %v1574 = vunpack.c.l.bf16 %v1542
    %v1575 = vunpack.c.l.bf16 %v1543
    %v1576 = vunpack.c.l.bf16 %v1544
    %v1577 = vunpack.c.l.bf16 %v1545
    %v1578 = vunpack.c.l.bf16 %v1546
    %v1579 = vunpack.c.l.bf16 %v1547
    %v1580 = vunpack.c.l.bf16 %v1548
    %v1581 = vunpack.c.l.bf16 %v1549
    %v1582 = vunpack.c.l.bf16 %v1550
    %v1583 = vunpack.c.l.bf16 %v1551
    %v1584 = vunpack.c.l.bf16 %v1552
    %v1585 = vmul.f32 %v1553, %v1427
    %v1586 = vmul.f32 %v1554, %v1430
    %v1587 = vmul.f32 %v1555, %v1433
    %v1588 = vmul.f32 %v1556, %v1436
    %v1589 = vmul.f32 %v1557, %v1439
    %v1590 = vmul.f32 %v1558, %v1442
    %v1591 = vmul.f32 %v1559, %v1445
    %v1592 = vmul.f32 %v1560, %v1448
    %v1593 = vmul.f32 %v1561, %v1451
    %v1594 = vmul.f32 %v1562, %v1454
    %v1595 = vmul.f32 %v1563, %v1457
    %v1596 = vmul.f32 %v1564, %v1460
    %v1597 = vmul.f32 %v1565, %v1463
    %v1598 = vmul.f32 %v1566, %v1466
    %v1599 = vmul.f32 %v1567, %v1469
    %v1600 = vmul.f32 %v1568, %v1472
    %v1601 = vmul.f32 %v1569, %v1475
    %v1602 = vmul.f32 %v1570, %v1478
    %v1603 = vmul.f32 %v1571, %v1481
    %v1604 = vmul.f32 %v1572, %v1484
    %v1605 = vmul.f32 %v1573, %v1487
    %v1606 = vmul.f32 %v1574, %v1490
    %v1607 = vmul.f32 %v1575, %v1493
    %v1608 = vmul.f32 %v1576, %v1496
    %v1609 = vmul.f32 %v1577, %v1499
    %v1610 = vmul.f32 %v1578, %v1502
    %v1611 = vmul.f32 %v1579, %v1505
    %v1612 = vmul.f32 %v1580, %v1508
    %v1613 = vmul.f32 %v1581, %v1511
    %v1614 = vmul.f32 %v1582, %v1514
    %v1615 = vmul.f32 %v1583, %v1517
    %v1616 = vmul.f32 %v1584, %v1520
    %v1617 = vsel %vm889, %v1585, 0.0
    %v1618 = vsel %vm889, %v1586, 0.0
    %v1619 = vadd.f32 %v1617, %v1618
    %v1620 = vsel %vm889, %v1587, 0.0
    %v1621 = vadd.f32 %v1619, %v1620
    %v1622 = vsel %vm889, %v1588, 0.0
    %v1623 = vadd.f32 %v1621, %v1622
    %v1624 = vsel %vm889, %v1589, 0.0
    %v1625 = vadd.f32 %v1623, %v1624
    %v1626 = vsel %vm889, %v1590, 0.0
    %v1627 = vadd.f32 %v1625, %v1626
    %v1628 = vsel %vm889, %v1591, 0.0
    %v1629 = vadd.f32 %v1627, %v1628
    %v1630 = vsel %vm889, %v1592, 0.0
    %v1631 = vadd.f32 %v1629, %v1630
    %v1632 = vsel %vm889, %v1593, 0.0
    %v1633 = vadd.f32 %v1631, %v1632
    %v1634 = vsel %vm889, %v1594, 0.0
    %v1635 = vadd.f32 %v1633, %v1634
    %v1636 = vsel %vm889, %v1595, 0.0
    %v1637 = vadd.f32 %v1635, %v1636
    %v1638 = vsel %vm889, %v1596, 0.0
    %v1639 = vadd.f32 %v1637, %v1638
    %v1640 = vsel %vm889, %v1597, 0.0
    %v1641 = vadd.f32 %v1639, %v1640
    %v1642 = vsel %vm889, %v1598, 0.0
    %v1643 = vadd.f32 %v1641, %v1642
    %v1644 = vsel %vm889, %v1599, 0.0
    %v1645 = vadd.f32 %v1643, %v1644
    %v1646 = vsel %vm889, %v1600, 0.0
    %v1647 = vadd.f32 %v1645, %v1646
    %v1648 = vsel %vm889, %v1601, 0.0
    %v1649 = vadd.f32 %v1647, %v1648
    %v1650 = vsel %vm889, %v1602, 0.0
    %v1651 = vadd.f32 %v1649, %v1650
    %v1652 = vsel %vm889, %v1603, 0.0
    %v1653 = vadd.f32 %v1651, %v1652
    %v1654 = vsel %vm889, %v1604, 0.0
    %v1655 = vadd.f32 %v1653, %v1654
    %v1656 = vsel %vm889, %v1605, 0.0
    %v1657 = vadd.f32 %v1655, %v1656
    %v1658 = vsel %vm889, %v1606, 0.0
    %v1659 = vadd.f32 %v1657, %v1658
    %v1660 = vsel %vm889, %v1607, 0.0
    %v1661 = vadd.f32 %v1659, %v1660
    %v1662 = vsel %vm889, %v1608, 0.0
    %v1663 = vadd.f32 %v1661, %v1662
    %v1664 = vsel %vm889, %v1609, 0.0
    %v1665 = vadd.f32 %v1663, %v1664
    %v1666 = vsel %vm889, %v1610, 0.0
    %v1667 = vadd.f32 %v1665, %v1666
    %v1668 = vsel %vm889, %v1611, 0.0
    %v1669 = vadd.f32 %v1667, %v1668
    %v1670 = vsel %vm889, %v1612, 0.0
    %v1671 = vadd.f32 %v1669, %v1670
    %v1672 = vsel %vm889, %v1613, 0.0
    %v1673 = vadd.f32 %v1671, %v1672
    %v1674 = vsel %vm889, %v1614, 0.0
    %v1675 = vadd.f32 %v1673, %v1674
    %v1676 = vsel %vm889, %v1615, 0.0
    %v1677 = vadd.f32 %v1675, %v1676
    %v1678 = vsel %vm889, %v1616, 0.0
    %v1679 = vadd.f32 %v1677, %v1678
    %v1680 = vrot.slane %v1679, 4
    %v1681 = vadd.f32 %v1679, %v1680
    %v1682 = vrot.slane %v1681, 2
    %v1683 = vadd.f32 %v1681, %v1682
    %v1684 = vrot.slane %v1683, 1
    %v1685 = vadd.f32 %v1683, %v1684
    %v1686 = vld [vmem:[%s3] sm:$0xf]
    %v1687 = vld [vmem:[%s3 + $0x4] sm:$0xf]
    %v1688 = vld [vmem:[%s3 + $0x8] sm:$0xf]
    %v1689 = vld [vmem:[%s3 + $0xc] sm:$0xf]
    %v1690 = vld [vmem:[%s3 + $0x10] sm:$0xf]
    %v1691 = vld [vmem:[%s3 + $0x14] sm:$0xf]
    %v1692 = vld [vmem:[%s3 + $0x18] sm:$0xf]
    %v1693 = vld [vmem:[%s3 + $0x1c] sm:$0xf]
    %v1694 = vld [vmem:[%s3 + $0x20] sm:$0xf]
    %v1695 = vld [vmem:[%s3 + $0x24] sm:$0xf]
    %v1696 = vld [vmem:[%s3 + $0x28] sm:$0xf]
    %v1697 = vld [vmem:[%s3 + $0x2c] sm:$0xf]
    %v1698 = vld [vmem:[%s3 + $0x30] sm:$0xf]
    %v1699 = vld [vmem:[%s3 + $0x34] sm:$0xf]
    %v1700 = vld [vmem:[%s3 + $0x38] sm:$0xf]
    %v1701 = vld [vmem:[%s3 + $0x3c] sm:$0xf]
    %v1702 = vld [vmem:[%s11] sm:$0xff]
    %v1703 = vld [vmem:[%s11 + $0x8] sm:$0xff]
    %v1704 = vld [vmem:[%s11 + $0x10] sm:$0xff]
    %v1705 = vld [vmem:[%s11 + $0x18] sm:$0xff]
    %v1706 = vld [vmem:[%s11 + $0x20] sm:$0xff]
    %v1707 = vld [vmem:[%s11 + $0x28] sm:$0xff]
    %v1708 = vld [vmem:[%s11 + $0x30] sm:$0xff]
    %v1709 = vld [vmem:[%s11 + $0x38] sm:$0xff]
    %v1710 = vld [vmem:[%s11 + $0x40] sm:$0xff]
    %v1711 = vld [vmem:[%s11 + $0x48] sm:$0xff]
    %v1712 = vld [vmem:[%s11 + $0x50] sm:$0xff]
    %v1713 = vld [vmem:[%s11 + $0x58] sm:$0xff]
    %v1714 = vld [vmem:[%s11 + $0x60] sm:$0xff]
    %v1715 = vld [vmem:[%s11 + $0x68] sm:$0xff]
    %v1716 = vld [vmem:[%s11 + $0x70] sm:$0xff]
    %v1717 = vld [vmem:[%s11 + $0x78] sm:$0xff]
    %v1718 = vunpack.c.l.bf16 %v1686
    %v1719 = vunpack.c.l.bf16 %v1687
    %v1720 = vunpack.c.l.bf16 %v1688
    %v1721 = vunpack.c.l.bf16 %v1689
    %v1722 = vunpack.c.l.bf16 %v1690
    %v1723 = vunpack.c.l.bf16 %v1691
    %v1724 = vunpack.c.l.bf16 %v1692
    %v1725 = vunpack.c.l.bf16 %v1693
    %v1726 = vunpack.c.l.bf16 %v1694
    %v1727 = vunpack.c.l.bf16 %v1695
    %v1728 = vunpack.c.l.bf16 %v1696
    %v1729 = vunpack.c.l.bf16 %v1697
    %v1730 = vunpack.c.l.bf16 %v1698
    %v1731 = vunpack.c.l.bf16 %v1699
    %v1732 = vunpack.c.l.bf16 %v1700
    %v1733 = vunpack.c.l.bf16 %v1701
    %1735 = vset.pattern.permute.xlu0 0
    %1736 = vperm.xlu0 %1735, %v1702
    %v1737 = vpop.permute.xlu0 %1736
    %1740 = vset.pattern.permute.xlu0 0
    %1741 = vperm.xlu0 %1740, %v1703
    %v1742 = vpop.permute.xlu0 %1741
    %1745 = vset.pattern.permute.xlu0 0
    %1746 = vperm.xlu0 %1745, %v1704
    %v1747 = vpop.permute.xlu0 %1746
    %1750 = vset.pattern.permute.xlu0 0
    %1751 = vperm.xlu0 %1750, %v1705
    %v1752 = vpop.permute.xlu0 %1751
    %1755 = vset.pattern.permute.xlu0 0
    %1756 = vperm.xlu0 %1755, %v1706
    %v1757 = vpop.permute.xlu0 %1756
    %1760 = vset.pattern.permute.xlu0 0
    %1761 = vperm.xlu0 %1760, %v1707
    %v1762 = vpop.permute.xlu0 %1761
    %1765 = vset.pattern.permute.xlu0 0
    %1766 = vperm.xlu0 %1765, %v1708
    %v1767 = vpop.permute.xlu0 %1766
    %1770 = vset.pattern.permute.xlu0 0
    %1771 = vperm.xlu0 %1770, %v1709
    %v1772 = vpop.permute.xlu0 %1771
    %1775 = vset.pattern.permute.xlu0 0
    %1776 = vperm.xlu0 %1775, %v1710
    %v1777 = vpop.permute.xlu0 %1776
    %1780 = vset.pattern.permute.xlu0 0
    %1781 = vperm.xlu0 %1780, %v1711
    %v1782 = vpop.permute.xlu0 %1781
    %1785 = vset.pattern.permute.xlu0 0
    %1786 = vperm.xlu0 %1785, %v1712
    %v1787 = vpop.permute.xlu0 %1786
    %1790 = vset.pattern.permute.xlu0 0
    %1791 = vperm.xlu0 %1790, %v1713
    %v1792 = vpop.permute.xlu0 %1791
    %1795 = vset.pattern.permute.xlu0 0
    %1796 = vperm.xlu0 %1795, %v1714
    %v1797 = vpop.permute.xlu0 %1796
    %1800 = vset.pattern.permute.xlu0 0
    %1801 = vperm.xlu0 %1800, %v1715
    %v1802 = vpop.permute.xlu0 %1801
    %1805 = vset.pattern.permute.xlu0 0
    %1806 = vperm.xlu0 %1805, %v1716
    %v1807 = vpop.permute.xlu0 %1806
    %1810 = vset.pattern.permute.xlu0 0
    %1811 = vperm.xlu0 %1810, %v1717
    %v1812 = vpop.permute.xlu0 %1811
    %v1814 = vmul.f32 %v1718, %v1737
    %v1815 = vmul.f32 %v1719, %v1742
    %v1816 = vmul.f32 %v1720, %v1747
    %v1817 = vmul.f32 %v1721, %v1752
    %v1818 = vmul.f32 %v1722, %v1757
    %v1819 = vmul.f32 %v1723, %v1762
    %v1820 = vmul.f32 %v1724, %v1767
    %v1821 = vmul.f32 %v1725, %v1772
    %v1822 = vmul.f32 %v1726, %v1777
    %v1823 = vmul.f32 %v1727, %v1782
    %v1824 = vmul.f32 %v1728, %v1787
    %v1825 = vmul.f32 %v1729, %v1792
    %v1826 = vmul.f32 %v1730, %v1797
    %v1827 = vmul.f32 %v1731, %v1802
    %v1828 = vmul.f32 %v1732, %v1807
    %v1829 = vmul.f32 %v1733, %v1812
    %v1830 = vsel %vm889, %v1814, 0.0
    %v1831 = vsel %vm889, %v1815, 0.0
    %v1832 = vadd.f32 %v1830, %v1831
    %v1833 = vsel %vm889, %v1816, 0.0
    %v1834 = vadd.f32 %v1832, %v1833
    %v1835 = vsel %vm889, %v1817, 0.0
    %v1836 = vadd.f32 %v1834, %v1835
    %v1837 = vsel %vm889, %v1818, 0.0
    %v1838 = vadd.f32 %v1836, %v1837
    %v1839 = vsel %vm889, %v1819, 0.0
    %v1840 = vadd.f32 %v1838, %v1839
    %v1841 = vsel %vm889, %v1820, 0.0
    %v1842 = vadd.f32 %v1840, %v1841
    %v1843 = vsel %vm889, %v1821, 0.0
    %v1844 = vadd.f32 %v1842, %v1843
    %v1845 = vsel %vm889, %v1822, 0.0
    %v1846 = vadd.f32 %v1844, %v1845
    %v1847 = vsel %vm889, %v1823, 0.0
    %v1848 = vadd.f32 %v1846, %v1847
    %v1849 = vsel %vm889, %v1824, 0.0
    %v1850 = vadd.f32 %v1848, %v1849
    %v1851 = vsel %vm889, %v1825, 0.0
    %v1852 = vadd.f32 %v1850, %v1851
    %v1853 = vsel %vm889, %v1826, 0.0
    %v1854 = vadd.f32 %v1852, %v1853
    %v1855 = vsel %vm889, %v1827, 0.0
    %v1856 = vadd.f32 %v1854, %v1855
    %v1857 = vsel %vm889, %v1828, 0.0
    %v1858 = vadd.f32 %v1856, %v1857
    %v1859 = vsel %vm889, %v1829, 0.0
    %v1860 = vadd.f32 %v1858, %v1859
    %v1861 = vrot.slane %v1860, 4
    %v1862 = vadd.f32 %v1860, %v1861
    %v1863 = vrot.slane %v1862, 2
    %v1864 = vadd.f32 %v1862, %v1863
    %v1865 = vrot.slane %v1864, 1
    %v1866 = vadd.f32 %v1864, %v1865
    %v1867 = vadd.f32 %v1685, %v1866
    %v1868 = vld [vmem:[#allocation2] sm:$0x1]
    %1870 = vset.pattern.permute.xlu0 0
    %1871 = vperm.xlu0 %1870, %v1868
    %v1872 = vpop.permute.xlu0 %1871
    %v1874 = vlaneseq
    %v1875 = vshrl.u32 %v1874, 7
    %v1876 = vsub.s32 0, %v1875
    %v1877 = vrot.slane %v1872, %v1876
    %v1878 = vadd.f32 %v1867, %v1877
    %v1879 = vsub.f32 0.0, %v1878
    %v1880 = vmul.f32 %v1879, 1.442695
    %v1881 = vpow.pop %v1880
    %v1882 = vmul.f32 %v1878, 1.442695
    %v1883 = vpow.pop %v1882
    %vm1884 = vcmp.ge.f32.partialorder %v1878, 0.0
    %v1885 = vadd.f32 %v1881, 1.0
    %v1886 = vrcp.pop %v1885
    %v1887 = vmul.f32 1.0, %v1886
    %v1888 = vadd.f32 %v1883, 1.0
    %v1889 = vrcp.pop %v1888
    %v1890 = vmul.f32 %v1883, %v1889
    %v1891 = vsel %vm1884, %v1887, %v1890
    %vm1892 = vcmask 253952
    %1893 = vst.msk [vmem:[#allocation3] sm:$0x1] %vm1892, %v1891
    // Predicated region
    $region54: #{model3_forward.1} parent=1 // pred_check
      _
    $region55: #{model3_forward.1} parent=1 // pred_check_branch
      %1895 = sbr.rel (0) target = $region57
    $region56: #{model3_forward.1} parent=1 // pred_region
      %s1897 = ssub.s32 16, 16
      %1898 = vsyncadd [#allocation4], %s1897
      %s1900 = sshll.u32 [#allocation3], 4
      %s1901 = int_to_ptr.vmem [resolvable:$true] %s1900
      %1903 = dma.vmem_to_hbm [thread:$0]  %s1901, 16, %s13, [#allocation4]
    $region57: #{model3_forward.1} parent=1 // pred_fallthru
      _
    // Predicated region
    $region58: #{model3_forward.1} parent=1 // pred_check
      _
    $region59: #{model3_forward.1} parent=1 // pred_check_branch
      %1905 = sbr.rel (0) target = $region61
    $region60: #{model3_forward.1} parent=1 // pred_region
      %1906 = dma.done [#allocation4], 16
    $region61: #{model3_forward.1} parent=1 // pred_fallthru
      _
    %1907 = vsyncpa [#allocation4], 1

</llo_original>
